<compile_context>
chip_gen: v7x
topology: tpu7x:2x2x1
jax: 0.10.0
libtpu: 0.0.40
codegen_flags: <defaults>
</compile_context>

<pallas_src>
import functools

import jax
import jax.numpy as jnp
from jax import lax
from jax.experimental import pallas as pl
from jax.experimental.pallas import tpu as pltpu


def _self_attn_kernel(x_hbm, xq_ref, wq_ref, wk_ref, wv_ref,
                      bq_ref, bk_ref, bv_ref, gamma_ref,
                      out_ref, att_ref,
                      k_scr, v_scr, xbuf,
                      *, n_valid, n_pad, chunk):
    # x_hbm:   (B, C, Np) full padded image left in HBM (memory_space=ANY)
    # xq_ref:  (1, C, TQ) query strip (also the residual input)
    # w*_ref:  1x1 conv weights;  b*_ref: (Cout, 1) biases
    # gamma_ref: (1,) scalar in SMEM
    # out_ref: (1, C, TQ) ; att_ref: (1, TQ, Np)
    b = pl.program_id(0)
    i = pl.program_id(1)

    # Key / value projections for the whole image: computed once per batch
    # element, streamed from HBM in (C, chunk) pieces, cached in VMEM scratch
    # and reused by every query strip of this batch element.
    @pl.when(i == 0)
    def _():
        for c0 in range(0, n_pad, chunk):          # static trip count
            pltpu.sync_copy(x_hbm.at[b, :, pl.ds(c0, chunk)], xbuf)
            xc = xbuf[...]                                        # (C, chunk)
            k_scr[:, c0:c0 + chunk] = (
                jnp.dot(wk_ref[...], xc,
                        preferred_element_type=jnp.float32) + bk_ref[...])
            v_scr[:, c0:c0 + chunk] = (
                jnp.dot(wv_ref[...], xc,
                        preferred_element_type=jnp.float32) + bv_ref[...])

    x_tile = xq_ref[0]                                            # (C, TQ)

    # query projection for this strip
    q_tile = jnp.dot(wq_ref[...], x_tile,
                     preferred_element_type=jnp.float32) + bq_ref[...]

    # energy[i, j] = sum_c q[c, i] * k[c, j]  -> (TQ, Np); contract dim 0 of
    # both operands (no transpose copy materialized).
    energy = lax.dot_general(q_tile, k_scr[...],
                             dimension_numbers=(((0,), (0,)), ((), ())),
                             preferred_element_type=jnp.float32)

    if n_pad != n_valid:
        # mask padded key columns so they get zero attention weight
        col = lax.broadcasted_iota(jnp.int32, energy.shape, 1)
        energy = jnp.where(col < n_valid, energy, jnp.float32(-1e30))

    # softmax over the key axis; divide replaced by reciprocal + multiply
    m = jnp.max(energy, axis=-1, keepdims=True)
    e = jnp.exp(energy - m)
    s = jnp.sum(e, axis=-1, keepdims=True)
    att = e * pl.reciprocal(s, approx=False)                      # (TQ, Np)

    # out[c, i] = sum_j v[c, j] * att[i, j]  -> (C, TQ); contract the N axis.
    out_tile = lax.dot_general(v_scr[...], att,
                               dimension_numbers=(((1,), (1,)), ((), ())),
                               preferred_element_type=jnp.float32)

    gamma = gamma_ref[0]                                          # SMEM scalar
    out_ref[0] = (gamma * out_tile + x_tile).astype(out_ref.dtype)
    att_ref[0] = att.astype(att_ref.dtype)


def self_attn_forward(x, wq, bq, wk, bk, wv, bv, gamma, *, tq=256):
    """x: (B, C, W, H) f32. Conv weights in PyTorch (out, in, 1, 1) layout.

    Returns (out (B, C, W, H), attention (B, N, N)) with N = W*H.
    tq=256 fills the 256-wide v6e/v7x MXU; use tq=128 on v5e.
    """
    B, C, W, H = x.shape
    N = W * H
    Cq = wq.shape[0]

    # pad N up to a lane-aligned multiple of 128 (no TQ=N fallback)
    Np = ((N + 127) // 128) * 128
    TQ = tq if (Np % tq == 0) else 128          # 128 always divides Np
    CK = next(ck for ck in (512, 256, 128) if Np % ck == 0)

    x_cn = x.reshape(B, C, N)                   # free reshape, keeps NCHW order
    if Np != N:
        x_cn = jnp.pad(x_cn, ((0, 0), (0, 0), (0, Np - N)))

    wq2 = wq.reshape(Cq, C)
    wk2 = wk.reshape(Cq, C)
    wv2 = wv.reshape(C, C)
    bq2 = bq.reshape(Cq, 1)
    bk2 = bk.reshape(Cq, 1)
    bv2 = bv.reshape(C, 1)
    g1 = gamma.reshape(1).astype(jnp.float32)

    # explicit scoped-VMEM budget derived from the actual buffer sizes
    f32b = 4
    vmem_est = ((Cq + C) * Np * f32b             # k_scr + v_scr
                + C * CK * f32b                  # x stream buffer
                + 2 * 2 * C * TQ * f32b          # xq-in + out double buffers
                + 2 * TQ * Np * f32b             # att out double buffer
                + 4 * TQ * Np * f32b             # energy / e / att temps
                + (2 * Cq * C + C * C + 2 * Cq + C) * f32b)   # weights/biases
    vmem_limit = int(min(max(2 * vmem_est, 32 * 1024 * 1024),
                         100 * 1024 * 1024))

    kernel = functools.partial(_self_attn_kernel,
                               n_valid=N, n_pad=Np, chunk=CK)

    out_cn, att = pl.pallas_call(
        kernel,
        out_shape=(jax.ShapeDtypeStruct((B, C, Np), jnp.float32),
                   jax.ShapeDtypeStruct((B, Np, Np), jnp.float32)),
        grid_spec=pltpu.PrefetchScalarGridSpec(
            num_scalar_prefetch=0,
            grid=(B, Np // TQ),
            in_specs=[
                # full image stays in HBM; streamed manually at i == 0
                pl.BlockSpec(memory_space=pl.ANY),
                # query strip of the same image (also used for the residual)
                pl.BlockSpec((1, C, TQ), lambda b, i: (b, 0, i)),
                pl.BlockSpec((Cq, C), lambda b, i: (0, 0)),
                pl.BlockSpec((Cq, C), lambda b, i: (0, 0)),
                pl.BlockSpec((C, C), lambda b, i: (0, 0)),
                pl.BlockSpec((Cq, 1), lambda b, i: (0, 0)),
                pl.BlockSpec((Cq, 1), lambda b, i: (0, 0)),
                pl.BlockSpec((C, 1), lambda b, i: (0, 0)),
                # scalar gamma lives on the scalar path
                pl.BlockSpec(memory_space=pltpu.MemorySpace.SMEM),
            ],
            out_specs=[
                pl.BlockSpec((1, C, TQ), lambda b, i: (b, 0, i)),
                pl.BlockSpec((1, TQ, Np), lambda b, i: (b, i, 0)),
            ],
            scratch_shapes=[
                pltpu.VMEM((Cq, Np), jnp.float32),   # cached key projection
                pltpu.VMEM((C, Np), jnp.float32),    # cached value projection
                pltpu.VMEM((C, CK), jnp.float32),    # x streaming buffer
            ],
        ),
        compiler_params=pltpu.CompilerParams(
            dimension_semantics=("parallel", "arbitrary"),
            vmem_limit_bytes=vmem_limit),
    )(x_cn, x_cn, wq2, wk2, wv2, bq2, bk2, bv2, g1)

    out = out_cn[:, :, :N].reshape(B, C, W, H)
    att = att[:, :N, :N]
    return out, att


def self_attn_reference(x, wq, bq, wk, bk, wv, bv, gamma):
    """Pure-JAX reference matching the PyTorch forward."""
    B, C, W, H = x.shape
    N = W * H
    xf = x.reshape(B, C, N)
    q = jnp.einsum('oc,bcn->bon', wq.reshape(-1, C), xf) + bq[None, :, None]
    k = jnp.einsum('oc,bcn->bon', wk.reshape(-1, C), xf) + bk[None, :, None]
    v = jnp.einsum('oc,bcn->bon', wv.reshape(-1, C), xf) + bv[None, :, None]
    energy = jnp.einsum('bci,bcj->bij', q, k)          # (B, N, N)
    att = jax.nn.softmax(energy, axis=-1)
    out = jnp.einsum('bcj,bij->bci', v, att)           # (B, C, N)
    out = out.reshape(B, C, W, H)
    out = gamma.reshape(()) * out + x
    return out, att


if __name__ == "__main__":
    key = jax.random.PRNGKey(0)

    B, C = 2, 32                        # in_dim=32 -> query/key channels = 4
    Cq = C // 8

    # (16,16): N=256, no padding, single strip at TQ=256
    # (12,12): N=144, padded to 256, exercises the key-padding mask
    # (24,24): N=576, padded to 640, multi-strip (TQ=128) + multi-chunk stream
    for (W, H) in [(16, 16), (12, 12), (24, 24)]:
        keys = jax.random.split(jax.random.fold_in(key, W * H), 8)
        N = W * H

        x = jax.random.normal(keys[0], (B, C, W, H), dtype=jnp.float32)
        # PyTorch Conv2d(k=1) parameter layouts: weight (out, in, 1, 1), bias (out,)
        wq = jax.random.normal(keys[1], (Cq, C, 1, 1), dtype=jnp.float32) * 0.1
        bq = jax.random.normal(keys[2], (Cq,), dtype=jnp.float32) * 0.1
        wk = jax.random.normal(keys[3], (Cq, C, 1, 1), dtype=jnp.float32) * 0.1
        bk = jax.random.normal(keys[4], (Cq,), dtype=jnp.float32) * 0.1
        wv = jax.random.normal(keys[5], (C, C, 1, 1), dtype=jnp.float32) * 0.1
        bv = jax.random.normal(keys[6], (C,), dtype=jnp.float32) * 0.1
        # gamma is a learnable scalar (init 0 in PyTorch); nonzero here so the
        # residual mix is actually exercised by the check.
        gamma = jax.random.normal(keys[7], (1,), dtype=jnp.float32)

        out, att = self_attn_forward(x, wq, bq, wk, bk, wv, bv, gamma)
        out = jax.block_until_ready(out)
        att = jax.block_until_ready(att)

        ref_out, ref_att = self_attn_reference(x, wq, bq, wk, bk, wv, bv, gamma)
        assert out.shape == (B, C, W, H), out.shape
        assert att.shape == (B, N, N), att.shape
        assert jnp.allclose(att, ref_att, atol=1e-5, rtol=1e-5), \
            (W, H, float(jnp.max(jnp.abs(att - ref_att))))
        assert jnp.allclose(out, ref_out, atol=1e-4, rtol=1e-4), \
            (W, H, float(jnp.max(jnp.abs(out - ref_out))))

    print("KERNEL_OK")
</pallas_src>

<mosaic_0001>
module attributes {stable_mosaic.version = 11 : i64} {
  func.func @_self_attn_kernel(%arg0: i32, %arg1: i32, %arg2: memref<2x32x256xf32, #tpu.memory_space<any>>, %arg3: memref<1x32x256xf32, #tpu.memory_space<vmem>>, %arg4: memref<4x32xf32, #tpu.memory_space<vmem>>, %arg5: memref<4x32xf32, #tpu.memory_space<vmem>>, %arg6: memref<32x32xf32, #tpu.memory_space<vmem>>, %arg7: memref<4x1xf32, #tpu.memory_space<vmem>>, %arg8: memref<4x1xf32, #tpu.memory_space<vmem>>, %arg9: memref<32x1xf32, #tpu.memory_space<vmem>>, %arg10: memref<1xf32, #tpu.memory_space<smem>>, %arg11: memref<1x32x256xf32, #tpu.memory_space<vmem>>, %arg12: memref<1x256x256xf32, #tpu.memory_space<vmem>>, %arg13: memref<4x256xf32, #tpu.memory_space<vmem>>, %arg14: memref<32x256xf32, #tpu.memory_space<vmem>>, %arg15: memref<32x256xf32, #tpu.memory_space<vmem>>) attributes {dimension_semantics = [#tpu.dimension_semantics<parallel>, #tpu.dimension_semantics<arbitrary>], iteration_bounds = array<i64: 2, 1>, scalar_prefetch = 0 : i64, scratch_operands = 3 : i64, tpu.core_type = #tpu.core_type<tc>, window_params = [{}, {transform_indices = @transform_1, window_bounds = array<i64: 1, 32, 256>}, {pipeline_mode = #tpu.pipeline_mode<synchronous>, transform_indices = @transform_2, window_bounds = array<i64: 4, 32>}, {pipeline_mode = #tpu.pipeline_mode<synchronous>, transform_indices = @transform_3, window_bounds = array<i64: 4, 32>}, {pipeline_mode = #tpu.pipeline_mode<synchronous>, transform_indices = @transform_4, window_bounds = array<i64: 32, 32>}, {pipeline_mode = #tpu.pipeline_mode<synchronous>, transform_indices = @transform_5, window_bounds = array<i64: 4, 1>}, {pipeline_mode = #tpu.pipeline_mode<synchronous>, transform_indices = @transform_6, window_bounds = array<i64: 4, 1>}, {pipeline_mode = #tpu.pipeline_mode<synchronous>, transform_indices = @transform_7, window_bounds = array<i64: 32, 1>}, {transform_indices = @transform_8, window_bounds = array<i64: 1>}, {transform_indices = @transform_9, window_bounds = array<i64: 1, 32, 256>}, {transform_indices = @transform_10, window_bounds = array<i64: 1, 256, 256>}]} {
    %c0_i32 = arith.constant 0 : i32
    %0 = arith.cmpi eq, %arg1, %c0_i32 : i32
    %1 = arith.extui %0 : i1 to i32
    %c0_i32_0 = arith.constant 0 : i32
    %2 = arith.cmpi ne, %1, %c0_i32_0 : i32
    scf.if %2 {
      "tpu.region"() ({
        %47 = tpu.sem_alloc : memref<!tpu.dma_semaphore, #tpu.memory_space<semaphore_mem>>
        %c0_i32_38 = arith.constant 0 : i32
        %c0_i32_39 = arith.constant 0 : i32
        %48 = tpu.memref_slice %arg2[%arg0, %c0_i32_38, %c0_i32_39] : memref<2x32x256xf32, #tpu.memory_space<any>> -> memref<1x32x256xf32, #tpu.memory_space<any>>
        %49 = tpu.memref_squeeze %48 : memref<1x32x256xf32, #tpu.memory_space<any>> -> memref<32x256xf32, #tpu.memory_space<any>>
        tpu.enqueue_dma source(%49 : memref<32x256xf32, #tpu.memory_space<any>>) target(%arg15 : memref<32x256xf32, #tpu.memory_space<vmem>>) target_semaphore(%47 : memref<!tpu.dma_semaphore, #tpu.memory_space<semaphore_mem>>)
        %c0_i32_40 = arith.constant 0 : i32
        %c0_i32_41 = arith.constant 0 : i32
        %50 = tpu.memref_slice %arg2[%arg0, %c0_i32_40, %c0_i32_41] : memref<2x32x256xf32, #tpu.memory_space<any>> -> memref<1x32x256xf32, #tpu.memory_space<any>>
        %51 = tpu.memref_squeeze %50 : memref<1x32x256xf32, #tpu.memory_space<any>> -> memref<32x256xf32, #tpu.memory_space<any>>
        tpu.wait_dma2 semaphore(%47 : memref<!tpu.dma_semaphore, #tpu.memory_space<semaphore_mem>>) src(%51 : memref<32x256xf32, #tpu.memory_space<any>>) dst(%arg15 : memref<32x256xf32, #tpu.memory_space<vmem>>)
        tpu.yield
      }) : () -> ()
      %c0_22 = arith.constant 0 : index
      %c0_23 = arith.constant 0 : index
      %34 = vector.load %arg15[%c0_22, %c0_23] : memref<32x256xf32, #tpu.memory_space<vmem>>, vector<32x256xf32>
      %c0_24 = arith.constant 0 : index
      %c0_25 = arith.constant 0 : index
      %35 = vector.load %arg5[%c0_24, %c0_25] : memref<4x32xf32, #tpu.memory_space<vmem>>, vector<4x32xf32>
      %cst_26 = arith.constant dense<0.000000e+00> : vector<4x256xf32>
      %36 = tpu.matmul %35, %34, %cst_26 {dimension_numbers = #tpu.dot_dimension_numbers<[1], [0], [0], [1], [0, 0, 1, 1], [], []>} : vector<4x32xf32>, vector<32x256xf32>, vector<4x256xf32> -> vector<4x256xf32>
      %c0_27 = arith.constant 0 : index
      %c0_28 = arith.constant 0 : index
      %37 = vector.load %arg8[%c0_27, %c0_28] : memref<4x1xf32, #tpu.memory_space<vmem>>, vector<4x1xf32>
      %38 = vector.broadcast %37 : vector<4x1xf32> to vector<4x256xf32>
      %39 = arith.addf %36, %38 : vector<4x256xf32>
      %c0_29 = arith.constant 0 : index
      %c0_30 = arith.constant 0 : index
      %40 = vector.load %arg13[%c0_29, %c0_30] : memref<4x256xf32, #tpu.memory_space<vmem>>, vector<4x256xf32>
      tpu.vector_store %arg13[%c0_29, %c0_30], %39 {strides = array<i32>} : memref<4x256xf32, #tpu.memory_space<vmem>>, vector<4x256xf32>,
      %c0_31 = arith.constant 0 : index
      %c0_32 = arith.constant 0 : index
      %41 = vector.load %arg6[%c0_31, %c0_32] : memref<32x32xf32, #tpu.memory_space<vmem>>, vector<32x32xf32>
      %cst_33 = arith.constant dense<0.000000e+00> : vector<32x256xf32>
      %42 = tpu.matmul %41, %34, %cst_33 {dimension_numbers = #tpu.dot_dimension_numbers<[1], [0], [0], [1], [0, 0, 1, 1], [], []>} : vector<32x32xf32>, vector<32x256xf32>, vector<32x256xf32> -> vector<32x256xf32>
      %c0_34 = arith.constant 0 : index
      %c0_35 = arith.constant 0 : index
      %43 = vector.load %arg9[%c0_34, %c0_35] : memref<32x1xf32, #tpu.memory_space<vmem>>, vector<32x1xf32>
      %44 = vector.broadcast %43 : vector<32x1xf32> to vector<32x256xf32>
      %45 = arith.addf %42, %44 : vector<32x256xf32>
      %c0_36 = arith.constant 0 : index
      %c0_37 = arith.constant 0 : index
      %46 = vector.load %arg14[%c0_36, %c0_37] : memref<32x256xf32, #tpu.memory_space<vmem>>, vector<32x256xf32>
      tpu.vector_store %arg14[%c0_36, %c0_37], %45 {strides = array<i32>} : memref<32x256xf32, #tpu.memory_space<vmem>>, vector<32x256xf32>,
    } else {
    }
    %c0 = arith.constant 0 : index
    %c0_1 = arith.constant 0 : index
    %c0_2 = arith.constant 0 : index
    %3 = vector.load %arg3[%c0, %c0_1, %c0_2] : memref<1x32x256xf32, #tpu.memory_space<vmem>>, vector<1x32x256xf32>
    %4 = vector.shape_cast %3 : vector<1x32x256xf32> to vector<32x256xf32>
    %c0_3 = arith.constant 0 : index
    %c0_4 = arith.constant 0 : index
    %5 = vector.load %arg4[%c0_3, %c0_4] : memref<4x32xf32, #tpu.memory_space<vmem>>, vector<4x32xf32>
    %cst = arith.constant dense<0.000000e+00> : vector<4x256xf32>
    %6 = tpu.matmul %5, %4, %cst {dimension_numbers = #tpu.dot_dimension_numbers<[1], [0], [0], [1], [0, 0, 1, 1], [], []>} : vector<4x32xf32>, vector<32x256xf32>, vector<4x256xf32> -> vector<4x256xf32>
    %c0_5 = arith.constant 0 : index
    %c0_6 = arith.constant 0 : index
    %7 = vector.load %arg7[%c0_5, %c0_6] : memref<4x1xf32, #tpu.memory_space<vmem>>, vector<4x1xf32>
    %8 = vector.broadcast %7 : vector<4x1xf32> to vector<4x256xf32>
    %9 = arith.addf %6, %8 : vector<4x256xf32>
    %c0_7 = arith.constant 0 : index
    %c0_8 = arith.constant 0 : index
    %10 = vector.load %arg13[%c0_7, %c0_8] : memref<4x256xf32, #tpu.memory_space<vmem>>, vector<4x256xf32>
    %cst_9 = arith.constant dense<0.000000e+00> : vector<256x256xf32>
    %11 = tpu.matmul %9, %10, %cst_9 {dimension_numbers = #tpu.dot_dimension_numbers<[0], [0], [1], [1], [0, 1, 1, 1], [], []>} : vector<4x256xf32>, vector<4x256xf32>, vector<256x256xf32> -> vector<256x256xf32>
    %cst_10 = arith.constant dense<0xFF800000> : vector<256xf32>
    %12 = vector.multi_reduction <maximumf>, %11, %cst_10 [1] : vector<256x256xf32> to vector<256xf32>
    %13 = vector.shape_cast %12 : vector<256xf32> to vector<256x1xf32>
    %14 = vector.broadcast %13 : vector<256x1xf32> to vector<256x256xf32>
    %15 = arith.subf %11, %14 : vector<256x256xf32>
    %16 = math.exp %15 : vector<256x256xf32>
    %cst_11 = arith.constant dense<0.000000e+00> : vector<256xf32>
    %17 = vector.multi_reduction <add>, %16, %cst_11 [1] : vector<256x256xf32> to vector<256xf32>
    %18 = vector.shape_cast %17 : vector<256xf32> to vector<256x1xf32>
    %19 = tpu.reciprocal %18 : vector<256x1xf32> -> vector<256x1xf32>
    %20 = vector.broadcast %19 : vector<256x1xf32> to vector<256x256xf32>
    %21 = arith.mulf %16, %20 : vector<256x256xf32>
    %c0_12 = arith.constant 0 : index
    %c0_13 = arith.constant 0 : index
    %22 = vector.load %arg14[%c0_12, %c0_13] : memref<32x256xf32, #tpu.memory_space<vmem>>, vector<32x256xf32>
    %cst_14 = arith.constant dense<0.000000e+00> : vector<32x256xf32>
    %23 = tpu.matmul %22, %21, %cst_14 {dimension_numbers = #tpu.dot_dimension_numbers<[1], [1], [0], [0], [0, 0, 1, 0], [], []>} : vector<32x256xf32>, vector<256x256xf32>, vector<32x256xf32> -> vector<32x256xf32>
    %c0_15 = arith.constant 0 : index
    %24 = memref.load %arg10[%c0_15] : memref<1xf32, #tpu.memory_space<smem>>
    %25 = vector.broadcast %24 : f32 to vector<32x256xf32>
    %26 = arith.mulf %25, %23 : vector<32x256xf32>
    %27 = arith.addf %26, %4 : vector<32x256xf32>
    %c0_16 = arith.constant 0 : index
    %c0_17 = arith.constant 0 : index
    %c0_18 = arith.constant 0 : index
    %28 = vector.load %arg11[%c0_16, %c0_17, %c0_18] : memref<1x32x256xf32, #tpu.memory_space<vmem>>, vector<1x32x256xf32>
    %29 = vector.shape_cast %28 : vector<1x32x256xf32> to vector<32x256xf32>
    %30 = vector.shape_cast %27 : vector<32x256xf32> to vector<1x32x256xf32>
    tpu.vector_store %arg11[%c0_16, %c0_17, %c0_18], %30 {strides = array<i32>} : memref<1x32x256xf32, #tpu.memory_space<vmem>>, vector<1x32x256xf32>,
    %c0_19 = arith.constant 0 : index
    %c0_20 = arith.constant 0 : index
    %c0_21 = arith.constant 0 : index
    %31 = vector.load %arg12[%c0_19, %c0_20, %c0_21] : memref<1x256x256xf32, #tpu.memory_space<vmem>>, vector<1x256x256xf32>
    %32 = vector.shape_cast %31 : vector<1x256x256xf32> to vector<256x256xf32>
    %33 = vector.shape_cast %21 : vector<256x256xf32> to vector<1x256x256xf32>
    tpu.vector_store %arg12[%c0_19, %c0_20, %c0_21], %33 {strides = array<i32>} : memref<1x256x256xf32, #tpu.memory_space<vmem>>, vector<1x256x256xf32>,
    return
  }
  func.func @transform_1(%arg0: i32, %arg1: i32) -> (i32, i32, i32) {
    %c0_i32 = arith.constant 0 : i32
    %c0_i32_0 = arith.constant 0 : i32
    return %arg0, %c0_i32, %arg1 : i32, i32, i32
  }
  func.func @transform_2(%arg0: i32, %arg1: i32) -> (i32, i32) {
    %c0_i32 = arith.constant 0 : i32
    %c0_i32_0 = arith.constant 0 : i32
    %c0_i32_1 = arith.constant 0 : i32
    return %c0_i32, %c0_i32_0 : i32, i32
  }
  func.func @transform_3(%arg0: i32, %arg1: i32) -> (i32, i32) {
    %c0_i32 = arith.constant 0 : i32
    %c0_i32_0 = arith.constant 0 : i32
    %c0_i32_1 = arith.constant 0 : i32
    return %c0_i32, %c0_i32_0 : i32, i32
  }
  func.func @transform_4(%arg0: i32, %arg1: i32) -> (i32, i32) {
    %c0_i32 = arith.constant 0 : i32
    %c0_i32_0 = arith.constant 0 : i32
    %c0_i32_1 = arith.constant 0 : i32
    return %c0_i32, %c0_i32_0 : i32, i32
  }
  func.func @transform_5(%arg0: i32, %arg1: i32) -> (i32, i32) {
    %c0_i32 = arith.constant 0 : i32
    %c0_i32_0 = arith.constant 0 : i32
    %c0_i32_1 = arith.constant 0 : i32
    return %c0_i32, %c0_i32_0 : i32, i32
  }
  func.func @transform_6(%arg0: i32, %arg1: i32) -> (i32, i32) {
    %c0_i32 = arith.constant 0 : i32
    %c0_i32_0 = arith.constant 0 : i32
    %c0_i32_1 = arith.constant 0 : i32
    return %c0_i32, %c0_i32_0 : i32, i32
  }
  func.func @transform_7(%arg0: i32, %arg1: i32) -> (i32, i32) {
    %c0_i32 = arith.constant 0 : i32
    %c0_i32_0 = arith.constant 0 : i32
    %c0_i32_1 = arith.constant 0 : i32
    return %c0_i32, %c0_i32_0 : i32, i32
  }
  func.func @transform_8(%arg0: i32, %arg1: i32) -> i32 {
    %c0_i32 = arith.constant 0 : i32
    %c0_i32_0 = arith.constant 0 : i32
    return %c0_i32 : i32
  }
  func.func @transform_9(%arg0: i32, %arg1: i32) -> (i32, i32, i32) {
    %c0_i32 = arith.constant 0 : i32
    %c0_i32_0 = arith.constant 0 : i32
    return %arg0, %c0_i32, %arg1 : i32, i32, i32
  }
  func.func @transform_10(%arg0: i32, %arg1: i32) -> (i32, i32, i32) {
    %c0_i32 = arith.constant 0 : i32
    %c0_i32_0 = arith.constant 0 : i32
    return %arg0, %arg1, %c0_i32 : i32, i32, i32
  }
}

</mosaic_0001>

<llo_original>
// kernel: tpu_custom_call.1
$region0: #{tpu_custom_call.1}
  #allocation0 [shape = 'u32[]', space=smem, size = 0x4, offset = 0x4, fixed_abs, tag = 'smem constant byte address 0x4 - core index']
  #allocation1 [shape = 'u32[144,128]{1,0:T(1,128)}', space=vmem, size = 0x12000, scoped, tag = 'internal scratch']
  #allocation2 [shape = 'f32[4,256]{1,0:T(4,128)}', space=vmem, size = 0x1000, scoped, tag = 'scratch operand']
  #allocation3 [shape = 'f32[32,256]{1,0:T(8,128)}', space=vmem, size = 0x8000, scoped, tag = 'scratch operand']
  #allocation4 [shape = 'f32[32,256]{1,0:T(8,128)}', space=vmem, size = 0x8000, scoped, tag = 'scratch operand']
  #allocation5 [shape = 'f32[1]{0:T(128)S(6)}', space=smem, size = 0x200, scoped, tag = 'scoped memory for tpu_custom_call.1']
  #allocation13 [shape = 's32[]', space=sflag, size = 0x4, offset = 0, fixed_abs, tag = 'sflag constant byte address 0x0 - dummy sync flag']
  #allocation14 [shape = 's32[]', space=sflag, size = 0x4, offset = 0, fixed_abs, tag = 'sflag constant byte address 0x0 - dummy sync flag']
  #allocation15 [shape = 'u32[]', space=smem, size = 0x4, offset = 0x44, fixed_abs, tag = 'smem constant byte address 0x44 - assertion arg 0']
  #allocation16 [shape = 'u32[]', space=smem, size = 0x4, offset = 0x48, fixed_abs, tag = 'smem constant byte address 0x48 - assertion arg 1']
  %s0 = inlined_call_operand.hbm [shape: f32[2,32,256], index: 0, kind: input, shape index: {}]
  %s1 = inlined_call_operand.hbm [shape: f32[2,32,256], index: 1, kind: input, shape index: {}]
  %s2 = inlined_call_operand.vmem [shape: f32[4,32], index: 2, kind: input, shape index: {}]
  %s3 = inlined_call_operand.vmem [shape: f32[4,32], index: 3, kind: input, shape index: {}]
  %s4 = inlined_call_operand.vmem [shape: f32[32,32], index: 4, kind: input, shape index: {}]
  %s5 = inlined_call_operand.vmem [shape: f32[4,1], index: 5, kind: input, shape index: {}]
  %s6 = inlined_call_operand.vmem [shape: f32[4,1], index: 6, kind: input, shape index: {}]
  %s7 = inlined_call_operand.vmem [shape: f32[32,1], index: 7, kind: input, shape index: {}]
  %s8 = inlined_call_operand.<no memory space> [shape: f32[1], index: 8, kind: input, shape index: {}]
  %s9 = inlined_call_operand.hbm [shape: f32[2,32,256], index: 9, kind: output, shape index: {0}]
  %s10 = inlined_call_operand.hbm [shape: f32[2,256,256], index: 10, kind: output, shape index: {1}]
  %11 = xla_tuple %s9, %s10
  %s12 = sld [smem:[#allocation0]]
  $region86: #{tpu_custom_call.1} parent=0
    _
  %s14 = ssub.s32 1, %s12
  %s15 = scalar_select 0, %s14, %s12
  %16 = sst [smem:[#allocation5]] %s8
  $region1: #{tpu_custom_call.1} parent=0
    #allocation6 [shape = 'u8[65536]{0}', space=vmem, size = 0x10000, scoped, tag = 'input window, operand 1']
    #allocation7 [shape = 's32[2]{0}', space=sflag, size = 0x8, scoped, tag = 'scoped memory for tpu_custom_call.1']
    #allocation8 [shape = 's32[2]{0}', space=sflag, size = 0x8, scoped, tag = 'scoped memory for tpu_custom_call.1']
    #allocation9 [shape = 'u8[65536]{0}', space=vmem, size = 0x10000, scoped, tag = 'output window, operand 0']
    #allocation10 [shape = 'u8[524288]{0}', space=vmem, size = 0x80000, scoped, tag = 'output window, operand 1']
    #allocation11 [shape = 's32[2]{0}', space=sflag, size = 0x8, scoped, tag = 'scoped memory for tpu_custom_call.1']
    %17 = vsyncpa [#allocation7], 0
    %s18 = scalar_lea.sflag [#allocation7], 1
    %19 = vsyncpa %s18, 0
    %20 = vsyncpa [#allocation8], 0
    %s21 = scalar_lea.sflag [#allocation8], 1
    %22 = vsyncpa %s21, 0
    %23 = vsyncpa [#allocation11], 0
    %s24 = scalar_lea.sflag [#allocation11], 1
    %25 = vsyncpa %s24, 0
    loop: start=0, step=1, limit=4
    $region2: #{tpu_custom_call.1} parent=1 // loop_pre_header
      _
    $region3: #{tpu_custom_call.1} parent=1 // loop_header
      %s27 = sphi 0, %s31
      %p28 = scmp.ge.s32.totalorder %s27, 4
      %s34 = sphi 0, %s46
      %s35 = sphi 0, %s42
      %s36 = sphi 0, %s34
      %s37 = sphi 0, %s35
      %s38 = sphi 0, %s36
      %s39 = sphi 0, %s37
      %s51 = sphi 0, %s53
      %s54 = sphi 0, %s51
      %s55 = sphi 0, %s54
      %s71 = sphi 0, %s55
      %s75 = sphi 0, %s75
      %s77 = sphi 0, %s75
      %s78 = sphi 0, %s77
      %s92 = sphi 0, %s78
      %s96 = sphi 0, %s96
      %s98 = sphi 0, %s96
      %s99 = sphi 0, %s98
      %s113 = sphi 0, %s99
      %s117 = sphi 0, %s117
      %s119 = sphi 0, %s117
      %s120 = sphi 0, %s119
      %s134 = sphi 0, %s120
      %s138 = sphi 0, %s138
      %s140 = sphi 0, %s138
      %s141 = sphi 0, %s140
      %s155 = sphi 0, %s141
      %s159 = sphi 0, %s159
      %s161 = sphi 0, %s159
      %s162 = sphi 0, %s161
      %s176 = sphi 0, %s162
      %s180 = sphi 0, %s180
      %s182 = sphi 0, %s180
      %s183 = sphi 0, %s182
      %s197 = sphi 0, %s183
      %s201 = sphi 0, %s201
      %s203 = sphi 0, %s201
      %s204 = sphi 0, %s203
      %s218 = sphi 0, %s204
      %s226 = sphi 0, %s228
      %s229 = sphi 0, %s226
      %s230 = sphi 0, %s229
      %s246 = sphi 0, %s230
      %s254 = sphi 0, %s256
      %s257 = sphi 0, %s254
      %s258 = sphi 0, %s257
      %s274 = sphi 0, %s258
    $region4: #{tpu_custom_call.1} parent=1 // loop_header_branch
      %30 = sbr.rel (%p28) target = $region8
    $region5: #{tpu_custom_call.1} parent=1 // loop_body
      %s32 = ssub.s32 %s27, 1
      %s33 = ssub.s32 %s27, 2
      %s40 = sadd.s32 1, %s35
      %p41 = scmp.ge.s32.totalorder %s40, 1
      %s42 = scalar_select %p41, 0, %s40
      %s43 = sadd.s32 1, %s34
      %s44 = scalar_select %p41, %s43, %s34
      %p45 = scmp.ge.s32.totalorder %s44, 2
      %s46 = scalar_select %p45, 0, %s44
      %s47 = ssub.s32 %s34, %s46
      %s48 = ssub.s32 %s35, %s42
      %s49 = sor.u32 %s47, %s48
      %p50 = scmp.eq.s32.totalorder %s49, 0
      %s52 = sadd.s32 %s51, 1
      %s53 = scalar_select %p50, %s51, %s52
      %p56 = pneg %p50
      %p57 = scmp.eq.s32.totalorder %s27, 1
      %p58 = por %p56, %p57
      %p59 = scmp.ne.s32.totalorder %s51, %s54
      %p60 = scmp.eq.s32.totalorder %s27, 0
      %p61 = por %p59, %p60
      %p62 = scmp.ne.s32.totalorder %s51, %s54
      %p63 = scmp.eq.s32.totalorder %s32, 1
      %p64 = por %p62, %p63
      %p65 = scmp.ne.s32.totalorder %s54, %s55
      %p66 = scmp.eq.s32.totalorder %s32, 0
      %p67 = por %p65, %p66
      %p68 = scmp.ne.s32.totalorder %s54, %s55
      %p69 = scmp.eq.s32.totalorder %s33, 1
      %p70 = por %p68, %p69
      %p72 = scmp.ne.s32.totalorder %s55, %s71
      %p73 = scmp.eq.s32.totalorder %s33, 0
      %p74 = por %p72, %p73
      %s76 = sadd.s32 %s75, 1
      %p79 = scmp.eq.s32.totalorder %s27, 1
      %p80 = scmp.ne.s32.totalorder %s75, %s77
      %p81 = scmp.eq.s32.totalorder %s27, 0
      %p82 = por %p80, %p81
      %p83 = scmp.ne.s32.totalorder %s75, %s77
      %p84 = scmp.eq.s32.totalorder %s32, 1
      %p85 = por %p83, %p84
      %p86 = scmp.ne.s32.totalorder %s77, %s78
      %p87 = scmp.eq.s32.totalorder %s32, 0
      %p88 = por %p86, %p87
      %p89 = scmp.ne.s32.totalorder %s77, %s78
      %p90 = scmp.eq.s32.totalorder %s33, 1
      %p91 = por %p89, %p90
      %p93 = scmp.ne.s32.totalorder %s78, %s92
      %p94 = scmp.eq.s32.totalorder %s33, 0
      %p95 = por %p93, %p94
      %s97 = sadd.s32 %s96, 1
      %p100 = scmp.eq.s32.totalorder %s27, 1
      %p101 = scmp.ne.s32.totalorder %s96, %s98
      %p102 = scmp.eq.s32.totalorder %s27, 0
      %p103 = por %p101, %p102
      %p104 = scmp.ne.s32.totalorder %s96, %s98
      %p105 = scmp.eq.s32.totalorder %s32, 1
      %p106 = por %p104, %p105
      %p107 = scmp.ne.s32.totalorder %s98, %s99
      %p108 = scmp.eq.s32.totalorder %s32, 0
      %p109 = por %p107, %p108
      %p110 = scmp.ne.s32.totalorder %s98, %s99
      %p111 = scmp.eq.s32.totalorder %s33, 1
      %p112 = por %p110, %p111
      %p114 = scmp.ne.s32.totalorder %s99, %s113
      %p115 = scmp.eq.s32.totalorder %s33, 0
      %p116 = por %p114, %p115
      %s118 = sadd.s32 %s117, 1
      %p121 = scmp.eq.s32.totalorder %s27, 1
      %p122 = scmp.ne.s32.totalorder %s117, %s119
      %p123 = scmp.eq.s32.totalorder %s27, 0
      %p124 = por %p122, %p123
      %p125 = scmp.ne.s32.totalorder %s117, %s119
      %p126 = scmp.eq.s32.totalorder %s32, 1
      %p127 = por %p125, %p126
      %p128 = scmp.ne.s32.totalorder %s119, %s120
      %p129 = scmp.eq.s32.totalorder %s32, 0
      %p130 = por %p128, %p129
      %p131 = scmp.ne.s32.totalorder %s119, %s120
      %p132 = scmp.eq.s32.totalorder %s33, 1
      %p133 = por %p131, %p132
      %p135 = scmp.ne.s32.totalorder %s120, %s134
      %p136 = scmp.eq.s32.totalorder %s33, 0
      %p137 = por %p135, %p136
      %s139 = sadd.s32 %s138, 1
      %p142 = scmp.eq.s32.totalorder %s27, 1
      %p143 = scmp.ne.s32.totalorder %s138, %s140
      %p144 = scmp.eq.s32.totalorder %s27, 0
      %p145 = por %p143, %p144
      %p146 = scmp.ne.s32.totalorder %s138, %s140
      %p147 = scmp.eq.s32.totalorder %s32, 1
      %p148 = por %p146, %p147
      %p149 = scmp.ne.s32.totalorder %s140, %s141
      %p150 = scmp.eq.s32.totalorder %s32, 0
      %p151 = por %p149, %p150
      %p152 = scmp.ne.s32.totalorder %s140, %s141
      %p153 = scmp.eq.s32.totalorder %s33, 1
      %p154 = por %p152, %p153
      %p156 = scmp.ne.s32.totalorder %s141, %s155
      %p157 = scmp.eq.s32.totalorder %s33, 0
      %p158 = por %p156, %p157
      %s160 = sadd.s32 %s159, 1
      %p163 = scmp.eq.s32.totalorder %s27, 1
      %p164 = scmp.ne.s32.totalorder %s159, %s161
      %p165 = scmp.eq.s32.totalorder %s27, 0
      %p166 = por %p164, %p165
      %p167 = scmp.ne.s32.totalorder %s159, %s161
      %p168 = scmp.eq.s32.totalorder %s32, 1
      %p169 = por %p167, %p168
      %p170 = scmp.ne.s32.totalorder %s161, %s162
      %p171 = scmp.eq.s32.totalorder %s32, 0
      %p172 = por %p170, %p171
      %p173 = scmp.ne.s32.totalorder %s161, %s162
      %p174 = scmp.eq.s32.totalorder %s33, 1
      %p175 = por %p173, %p174
      %p177 = scmp.ne.s32.totalorder %s162, %s176
      %p178 = scmp.eq.s32.totalorder %s33, 0
      %p179 = por %p177, %p178
      %s181 = sadd.s32 %s180, 1
      %p184 = scmp.eq.s32.totalorder %s27, 1
      %p185 = scmp.ne.s32.totalorder %s180, %s182
      %p186 = scmp.eq.s32.totalorder %s27, 0
      %p187 = por %p185, %p186
      %p188 = scmp.ne.s32.totalorder %s180, %s182
      %p189 = scmp.eq.s32.totalorder %s32, 1
      %p190 = por %p188, %p189
      %p191 = scmp.ne.s32.totalorder %s182, %s183
      %p192 = scmp.eq.s32.totalorder %s32, 0
      %p193 = por %p191, %p192
      %p194 = scmp.ne.s32.totalorder %s182, %s183
      %p195 = scmp.eq.s32.totalorder %s33, 1
      %p196 = por %p194, %p195
      %p198 = scmp.ne.s32.totalorder %s183, %s197
      %p199 = scmp.eq.s32.totalorder %s33, 0
      %p200 = por %p198, %p199
      %s202 = sadd.s32 %s201, 1
      %p205 = scmp.eq.s32.totalorder %s27, 1
      %p206 = scmp.ne.s32.totalorder %s201, %s203
      %p207 = scmp.eq.s32.totalorder %s27, 0
      %p208 = por %p206, %p207
      %p209 = scmp.ne.s32.totalorder %s201, %s203
      %p210 = scmp.eq.s32.totalorder %s32, 1
      %p211 = por %p209, %p210
      %p212 = scmp.ne.s32.totalorder %s203, %s204
      %p213 = scmp.eq.s32.totalorder %s32, 0
      %p214 = por %p212, %p213
      %p215 = scmp.ne.s32.totalorder %s203, %s204
      %p216 = scmp.eq.s32.totalorder %s33, 1
      %p217 = por %p215, %p216
      %p219 = scmp.ne.s32.totalorder %s204, %s218
      %p220 = scmp.eq.s32.totalorder %s33, 0
      %p221 = por %p219, %p220
      %s222 = ssub.s32 %s34, %s46
      %s223 = ssub.s32 %s35, %s42
      %s224 = sor.u32 %s222, %s223
      %p225 = scmp.eq.s32.totalorder %s224, 0
      %s227 = sadd.s32 %s226, 1
      %s228 = scalar_select %p225, %s226, %s227
      %p231 = pneg %p225
      %p232 = scmp.eq.s32.totalorder %s27, 1
      %p233 = por %p231, %p232
      %p234 = scmp.ne.s32.totalorder %s226, %s229
      %p235 = scmp.eq.s32.totalorder %s27, 0
      %p236 = por %p234, %p235
      %p237 = scmp.ne.s32.totalorder %s226, %s229
      %p238 = scmp.eq.s32.totalorder %s32, 1
      %p239 = por %p237, %p238
      %p240 = scmp.ne.s32.totalorder %s229, %s230
      %p241 = scmp.eq.s32.totalorder %s32, 0
      %p242 = por %p240, %p241
      %p243 = scmp.ne.s32.totalorder %s229, %s230
      %p244 = scmp.eq.s32.totalorder %s33, 1
      %p245 = por %p243, %p244
      %p247 = scmp.ne.s32.totalorder %s230, %s246
      %p248 = scmp.eq.s32.totalorder %s33, 0
      %p249 = por %p247, %p248
      %s250 = ssub.s32 %s34, %s46
      %s251 = ssub.s32 %s35, %s42
      %s252 = sor.u32 %s250, %s251
      %p253 = scmp.eq.s32.totalorder %s252, 0
      %s255 = sadd.s32 %s254, 1
      %s256 = scalar_select %p253, %s254, %s255
      %p259 = pneg %p253
      %p260 = scmp.eq.s32.totalorder %s27, 1
      %p261 = por %p259, %p260
      %p262 = scmp.ne.s32.totalorder %s254, %s257
      %p263 = scmp.eq.s32.totalorder %s27, 0
      %p264 = por %p262, %p263
      %p265 = scmp.ne.s32.totalorder %s254, %s257
      %p266 = scmp.eq.s32.totalorder %s32, 1
      %p267 = por %p265, %p266
      %p268 = scmp.ne.s32.totalorder %s257, %s258
      %p269 = scmp.eq.s32.totalorder %s32, 0
      %p270 = por %p268, %p269
      %p271 = scmp.ne.s32.totalorder %s257, %s258
      %p272 = scmp.eq.s32.totalorder %s33, 1
      %p273 = por %p271, %p272
      %p275 = scmp.ne.s32.totalorder %s258, %s274
      %p276 = scmp.eq.s32.totalorder %s33, 0
      %p277 = por %p275, %p276
      %p278 = scmp.le.s32.totalorder 1, %s27
      %p279 = scmp.lt.s32.totalorder %s27, 3
      %p280 = pnand %p278, %p279
      %p281 = pneg %p280
      // Predicated region
      $region9: #{tpu_custom_call.1} parent=5 // pred_check
        _
      $region10: #{tpu_custom_call.1} parent=5 // pred_check_branch
        %283 = sbr.rel (%p280) target = $region12
      $region11: #{tpu_custom_call.1} parent=5 // pred_region
        %s284 = ssub.s32 %s27, 1
        // Predicated region
        $region13: #{tpu_custom_call.1} parent=11 // pred_check
          %p285 = pneg %p88
        $region14: #{tpu_custom_call.1} parent=11 // pred_check_branch
          %287 = sbr.rel (%p285) target = $region16
        $region15: #{tpu_custom_call.1} parent=11 // pred_region
          _
        $region16: #{tpu_custom_call.1} parent=11 // pred_fallthru
          _
        // Predicated region
        $region17: #{tpu_custom_call.1} parent=11 // pred_check
          %p288 = pneg %p109
        $region18: #{tpu_custom_call.1} parent=11 // pred_check_branch
          %290 = sbr.rel (%p288) target = $region20
        $region19: #{tpu_custom_call.1} parent=11 // pred_region
          _
        $region20: #{tpu_custom_call.1} parent=11 // pred_fallthru
          _
        // Predicated region
        $region21: #{tpu_custom_call.1} parent=11 // pred_check
          %p291 = pneg %p130
        $region22: #{tpu_custom_call.1} parent=11 // pred_check_branch
          %293 = sbr.rel (%p291) target = $region24
        $region23: #{tpu_custom_call.1} parent=11 // pred_region
          _
        $region24: #{tpu_custom_call.1} parent=11 // pred_fallthru
          _
        // Predicated region
        $region25: #{tpu_custom_call.1} parent=11 // pred_check
          %p294 = pneg %p151
        $region26: #{tpu_custom_call.1} parent=11 // pred_check_branch
          %296 = sbr.rel (%p294) target = $region28
        $region27: #{tpu_custom_call.1} parent=11 // pred_region
          _
        $region28: #{tpu_custom_call.1} parent=11 // pred_fallthru
          _
        // Predicated region
        $region29: #{tpu_custom_call.1} parent=11 // pred_check
          %p297 = pneg %p172
        $region30: #{tpu_custom_call.1} parent=11 // pred_check_branch
          %299 = sbr.rel (%p297) target = $region32
        $region31: #{tpu_custom_call.1} parent=11 // pred_region
          _
        $region32: #{tpu_custom_call.1} parent=11 // pred_fallthru
          _
        // Predicated region
        $region33: #{tpu_custom_call.1} parent=11 // pred_check
          %p300 = pneg %p193
        $region34: #{tpu_custom_call.1} parent=11 // pred_check_branch
          %302 = sbr.rel (%p300) target = $region36
        $region35: #{tpu_custom_call.1} parent=11 // pred_region
          _
        $region36: #{tpu_custom_call.1} parent=11 // pred_fallthru
          _
        // Predicated region
        $region37: #{tpu_custom_call.1} parent=11 // pred_check
          %p303 = pneg %p214
        $region38: #{tpu_custom_call.1} parent=11 // pred_check_branch
          %305 = sbr.rel (%p303) target = $region40
        $region39: #{tpu_custom_call.1} parent=11 // pred_region
          _
        $region40: #{tpu_custom_call.1} parent=11 // pred_fallthru
          _
      $region12: #{tpu_custom_call.1} parent=5 // pred_fallthru
        _
      %p306 = scmp.lt.s32.totalorder %s27, 2
      // Predicated region
      $region41: #{tpu_custom_call.1} parent=5 // pred_check
        %p307 = pneg %p306
      $region42: #{tpu_custom_call.1} parent=5 // pred_check_branch
        %309 = sbr.rel (%p307) target = $region44
      $region43: #{tpu_custom_call.1} parent=5 // pred_region
        // Predicated region
        $region45: #{tpu_custom_call.1} parent=43 // pred_check
          %p310 = pneg %p61
        $region46: #{tpu_custom_call.1} parent=43 // pred_check_branch
          %312 = sbr.rel (%p310) target = $region48
        $region47: #{tpu_custom_call.1} parent=43 // pred_region
          %s313 = sand.u32 %s51, 1
          %s314 = scalar_lea.sflag [#allocation7], %s313
          %s315 = sand.u32 %s51, 1
          %s316 = smul.addr %s315, 64
          %s317 = scalar_lea.vmem [#allocation6], %s316
          %s318 = smul.u32 2, %s35
          %s320 = ssub.s32 1024, 1024
          %321 = vsyncadd %s314, %s320
          %s322 = smul.addr %s34, 8
          %s323 = sadd.s32 %s318, %s322
          %s324 = smul.addr %s323, 128
          %s325 = scalar_lea.hbm %s1, %s324
          %s326 = sshll.u32 %s317, 4
          %s327 = int_to_ptr.vmem [resolvable:$true] %s326
          %332 = dma.hbm_to_vmem [thread:$0]  %s325, 1024, %s327, %s314, 256, 256, 16
        $region48: #{tpu_custom_call.1} parent=43 // pred_fallthru
          _
      $region44: #{tpu_custom_call.1} parent=5 // pred_fallthru
        _
      %p333 = scmp.le.s32.totalorder 1, %s27
      %p334 = scmp.lt.s32.totalorder %s27, 3
      %p335 = pnand %p333, %p334
      %p336 = pneg %p335
      // Predicated region
      $region49: #{tpu_custom_call.1} parent=5 // pred_check
        _
      $region50: #{tpu_custom_call.1} parent=5 // pred_check_branch
        %338 = sbr.rel (%p335) target = $region52
      $region51: #{tpu_custom_call.1} parent=5 // pred_region
        %s339 = ssub.s32 %s27, 1
        %s340 = sand.u32 %s54, 1
        %s341 = scalar_lea.sflag [#allocation7], %s340
        %s342 = sand.u32 %s54, 1
        %s343 = smul.addr %s342, 64
        %s344 = scalar_lea.vmem [#allocation6], %s343
        // Predicated region
        $region53: #{tpu_custom_call.1} parent=51 // pred_check
          %p345 = pneg %p67
        $region54: #{tpu_custom_call.1} parent=51 // pred_check_branch
          %347 = sbr.rel (%p345) target = $region56
        $region55: #{tpu_custom_call.1} parent=51 // pred_region
          %348 = dma.done %s341, 1024
        $region56: #{tpu_custom_call.1} parent=51 // pred_fallthru
          _
        %s349 = sand.u32 %s54, 1
        %s350 = scalar_lea.sflag [#allocation7], %s349
        %s351 = sand.u32 %s54, 1
        %s352 = smul.addr %s351, 64
        %s353 = scalar_lea.vmem [#allocation6], %s352
        %p354 = pneg %p67
        %p355 = pneg %p64
        %p356 = pneg %p88
        %p357 = pneg %p85
        %p358 = pneg %p109
        %p359 = pneg %p106
        %p360 = pneg %p130
        %p361 = pneg %p127
        %p362 = pneg %p151
        %p363 = pneg %p148
        %p364 = pneg %p172
        %p365 = pneg %p169
        %p366 = pneg %p193
        %p367 = pneg %p190
        %p368 = pneg %p214
        %p369 = pneg %p211
        %p370 = pneg %p242
        %p371 = pneg %p239
        %s372 = sand.u32 %s229, 1
        %s373 = scalar_lea.sflag [#allocation8], %s372
        %s374 = sand.u32 %s229, 1
        %s375 = smul.addr %s374, 64
        %s376 = scalar_lea.vmem [#allocation9], %s375
        %p377 = pneg %p270
        %p378 = pneg %p267
        %s379 = sand.u32 %s257, 1
        %s380 = scalar_lea.sflag [#allocation11], %s379
        %s381 = sand.u32 %s257, 1
        %s382 = smul.addr %s381, 512
        %s383 = scalar_lea.vmem [#allocation10], %s382
        %s384 = smul.u32 2, %s37
        %s385 = smul.u32 2, %s37
        %s386 = smul.u32 32, %s37
        %p387 = scmp.eq.s32.totalorder %s37, 0
        // Predicated region
        $region57: #{tpu_custom_call.1} parent=51 // pred_check
          %p388 = pneg %p387
        $region58: #{tpu_custom_call.1} parent=51 // pred_check_branch
          %390 = sbr.rel (%p388) target = $region60
        $region59: #{tpu_custom_call.1} parent=51 // pred_region
          $region61: #{tpu_custom_call.1} parent=59
            #allocation12 [shape = 's32[1]{0}', space=sflag, size = 0x4, scoped, tag = 'scoped memory for tpu_custom_call.1']
            %s391 = smul.u32 %s36, 8
            %s392 = smul.addr %s391, 128
            %s393 = scalar_lea.hbm %s0, %s392
            // Predicated region
            $region62: #{tpu_custom_call.1} parent=61 // pred_check
              _
            $region63: #{tpu_custom_call.1} parent=61 // pred_check_branch
              %395 = sbr.rel target = $region65
            $region64: #{tpu_custom_call.1} parent=61 // pred_region
              %396 = sst [smem:[#allocation15]] [#allocation14]
              %397 = sst [smem:[#allocation16]] [#allocation13]
            $region65: #{tpu_custom_call.1} parent=61 // pred_fallthru
              _
            %399 = shalt.err (0)
            %s401 = sshll.u32 [#allocation4], 4
            %s402 = int_to_ptr.vmem [resolvable:$true] %s401
            %404 = dma.hbm_to_vmem [thread:$0]  %s393, 1024, %s402, [#allocation12]
            %s405 = smul.u32 8, 4
            %s406 = smul.u32 %s405, 2
            %s407 = sshll.u32 %s406, 4
            %408 = dma.done [#allocation12], %s407
          %v409 = vld [vmem:[#allocation4] sm:$0xff]
          %v410 = vld [vmem:[#allocation4 + $0x8] sm:$0xff]
          %v411 = vld [vmem:[#allocation4 + $0x10] sm:$0xff]
          %v412 = vld [vmem:[#allocation4 + $0x18] sm:$0xff]
          %v413 = vld [vmem:[#allocation4 + $0x20] sm:$0xff]
          %v414 = vld [vmem:[#allocation4 + $0x28] sm:$0xff]
          %v415 = vld [vmem:[#allocation4 + $0x30] sm:$0xff]
          %v416 = vld [vmem:[#allocation4 + $0x38] sm:$0xff]
          %v417 = vld [vmem:[%s3] sm:$0xf]
          %v418 = vld [vmem:[%s6] sm:$0xf]
          %420 = vset.pattern.permute.xlu0 0
          %421 = vperm.xlu0 %420, %v418
          %v422 = vpop.permute.xlu0 %421
          %vm424 = vcmask 261120
          %v426 = vsel %vm424, %v417, 0
          %428 = vmatprep.subr.mxu0 %v410
          %429 = vmatpush1.msra.mxu0 %v409
          %430 = vmatprep.subr.mxu0 %v412
          %431 = vmatpush1.msra.mxu0 %v411
          %432 = vmatprep.subr.mxu0 %v414
          %433 = vmatpush1.msra.mxu0 %v413
          %434 = vmatprep.subr.mxu0 %v416
          %435 = vmatpush1.msra.mxu0 %v415
          %436 = vmatprep.subr.mxu0 0.0
          %437 = vmatpush1.msra.mxu0 0.0
          %438 = vmatprep.subr.mxu0 0.0
          %439 = vmatpush1.msra.mxu0 0.0
          %440 = vmatprep.subr.mxu0 0.0
          %441 = vmatpush1.msra.mxu0 0.0
          %442 = vmatprep.subr.mxu0 0.0
          %443 = vmatpush1.msra.mxu0 0.0
          %444 = vmatprep.subr.mxu0 0.0
          %445 = vmatpush1.msra.mxu0 0.0
          %446 = vmatprep.subr.mxu0 0.0
          %447 = vmatpush1.msra.mxu0 0.0
          %448 = vmatprep.subr.mxu0 0.0
          %449 = vmatpush1.msra.mxu0 0.0
          %450 = vmatprep.subr.mxu0 0.0
          %451 = vmatpush1.msra.mxu0 0.0
          %452 = vmatprep.subr.mxu0 0.0
          %453 = vmatpush1.msra.mxu0 0.0
          %454 = vmatprep.subr.mxu0 0.0
          %455 = vmatpush1.msra.mxu0 0.0
          %456 = vmatprep.subr.mxu0 0.0
          %457 = vmatpush1.msra.mxu0 0.0
          %458 = vmatprep.subr.mxu0 0.0
          %459 = vmatpush1.msra.mxu0 0.0
          %460 = vmatprep.subr.mxu0 0.0
          %461 = vmatpush1.msra.mxu0 0.0
          %462 = vmatprep.subr.mxu0 0.0
          %463 = vmatpush1.msra.mxu0 0.0
          %464 = vmatprep.subr.mxu0 0.0
          %465 = vmatpush1.msra.mxu0 0.0
          %466 = vmatprep.subr.mxu0 0.0
          %467 = vmatpush1.msra.mxu0 0.0
          %468 = vmatprep.subr.mxu0 0.0
          %469 = vmatpush1.msra.mxu0 0.0
          %470 = vmatprep.subr.mxu0 0.0
          %471 = vmatpush1.msra.mxu0 0.0
          %472 = vmatprep.subr.mxu0 0.0
          %473 = vmatpush1.msra.mxu0 0.0
          %474 = vmatprep.subr.mxu0 0.0
          %475 = vmatpush1.msra.mxu0 0.0
          %476 = vmatprep.subr.mxu0 0.0
          %477 = vmatpush1.msra.mxu0 0.0
          %478 = vmatprep.subr.mxu0 0.0
          %479 = vmatpush1.msra.mxu0 0.0
          %480 = vmatprep.subr.mxu0 0.0
          %481 = vmatpush1.msra.mxu0 0.0
          %482 = vmatprep.subr.mxu0 0.0
          %483 = vmatpush1.msra.mxu0 0.0
          %484 = vmatprep.subr.mxu0 0.0
          %485 = vmatpush1.msra.mxu0 0.0
          %486 = vmatprep.subr.mxu0 0.0
          %487 = vmatpush1.msra.mxu0 0.0
          %488 = vmatprep.subr.mxu0 0.0
          %489 = vmatpush1.msra.mxu0 0.0
          %490 = vmatprep.subr.mxu0 0.0
          %491 = vmatpush1.msra.mxu0 0.0
          %492 = vmatprep.mubr.f32.mxu0 0.0
          %493 = vmatmul.mubr.f32.gmra.mrb[0].mxu0 %v426
          %v494 = vpop.f32.mrb[0].mxu0
          %v495 = vadd.f32 %v422, %v494
          %v496 = vpop.f32.mrb[0].mxu0
          %v497 = vadd.f32 %v422, %v496
          %498 = vdwg.mxu0
          %v501 = vcombine.low %v495, %v497
          %503 = vst [vmem:[#allocation2] sm:$0xff] %v501
          %v504 = vld [vmem:[%s4] sm:$0xff]
          %v505 = vld [vmem:[%s4 + $0x8] sm:$0xff]
          %v506 = vld [vmem:[%s4 + $0x10] sm:$0xff]
          %v507 = vld [vmem:[%s4 + $0x18] sm:$0xff]
          %v508 = vld [vmem:[%s7] sm:$0xff]
          %v509 = vld [vmem:[%s7 + $0x8] sm:$0xff]
          %v510 = vld [vmem:[%s7 + $0x10] sm:$0xff]
          %v511 = vld [vmem:[%s7 + $0x18] sm:$0xff]
          %513 = vset.pattern.permute.xlu0 0
          %514 = vperm.xlu0 %513, %v508
          %v515 = vpop.permute.xlu0 %514
          %518 = vset.pattern.permute.xlu0 0
          %519 = vperm.xlu0 %518, %v509
          %v520 = vpop.permute.xlu0 %519
          %523 = vset.pattern.permute.xlu0 0
          %524 = vperm.xlu0 %523, %v510
          %v525 = vpop.permute.xlu0 %524
          %528 = vset.pattern.permute.xlu0 0
          %529 = vperm.xlu0 %528, %v511
          %v530 = vpop.permute.xlu0 %529
          %v533 = vsel %vm424, %v504, 0
          %v536 = vsel %vm424, %v505, 0
          %v539 = vsel %vm424, %v506, 0
          %v542 = vsel %vm424, %v507, 0
          %544 = vmatprep.subr.mxu0 %v410
          %545 = vmatpush1.msra.mxu0 %v409
          %546 = vmatprep.subr.mxu0 %v412
          %547 = vmatpush1.msra.mxu0 %v411
          %548 = vmatprep.subr.mxu0 %v414
          %549 = vmatpush1.msra.mxu0 %v413
          %550 = vmatprep.subr.mxu0 %v416
          %551 = vmatpush1.msra.mxu0 %v415
          %552 = vmatprep.subr.mxu0 0.0
          %553 = vmatpush1.msra.mxu0 0.0
          %554 = vmatprep.subr.mxu0 0.0
          %555 = vmatpush1.msra.mxu0 0.0
          %556 = vmatprep.subr.mxu0 0.0
          %557 = vmatpush1.msra.mxu0 0.0
          %558 = vmatprep.subr.mxu0 0.0
          %559 = vmatpush1.msra.mxu0 0.0
          %560 = vmatprep.subr.mxu0 0.0
          %561 = vmatpush1.msra.mxu0 0.0
          %562 = vmatprep.subr.mxu0 0.0
          %563 = vmatpush1.msra.mxu0 0.0
          %564 = vmatprep.subr.mxu0 0.0
          %565 = vmatpush1.msra.mxu0 0.0
          %566 = vmatprep.subr.mxu0 0.0
          %567 = vmatpush1.msra.mxu0 0.0
          %568 = vmatprep.subr.mxu0 0.0
          %569 = vmatpush1.msra.mxu0 0.0
          %570 = vmatprep.subr.mxu0 0.0
          %571 = vmatpush1.msra.mxu0 0.0
          %572 = vmatprep.subr.mxu0 0.0
          %573 = vmatpush1.msra.mxu0 0.0
          %574 = vmatprep.subr.mxu0 0.0
          %575 = vmatpush1.msra.mxu0 0.0
          %576 = vmatprep.subr.mxu0 0.0
          %577 = vmatpush1.msra.mxu0 0.0
          %578 = vmatprep.subr.mxu0 0.0
          %579 = vmatpush1.msra.mxu0 0.0
          %580 = vmatprep.subr.mxu0 0.0
          %581 = vmatpush1.msra.mxu0 0.0
          %582 = vmatprep.subr.mxu0 0.0
          %583 = vmatpush1.msra.mxu0 0.0
          %584 = vmatprep.subr.mxu0 0.0
          %585 = vmatpush1.msra.mxu0 0.0
          %586 = vmatprep.subr.mxu0 0.0
          %587 = vmatpush1.msra.mxu0 0.0
          %588 = vmatprep.subr.mxu0 0.0
          %589 = vmatpush1.msra.mxu0 0.0
          %590 = vmatprep.subr.mxu0 0.0
          %591 = vmatpush1.msra.mxu0 0.0
          %592 = vmatprep.subr.mxu0 0.0
          %593 = vmatpush1.msra.mxu0 0.0
          %594 = vmatprep.subr.mxu0 0.0
          %595 = vmatpush1.msra.mxu0 0.0
          %596 = vmatprep.subr.mxu0 0.0
          %597 = vmatpush1.msra.mxu0 0.0
          %598 = vmatprep.subr.mxu0 0.0
          %599 = vmatpush1.msra.mxu0 0.0
          %600 = vmatprep.subr.mxu0 0.0
          %601 = vmatpush1.msra.mxu0 0.0
          %602 = vmatprep.subr.mxu0 0.0
          %603 = vmatpush1.msra.mxu0 0.0
          %604 = vmatprep.subr.mxu0 0.0
          %605 = vmatpush1.msra.mxu0 0.0
          %606 = vmatprep.subr.mxu0 0.0
          %607 = vmatpush1.msra.mxu0 0.0
          %608 = vmatprep.mubr.f32.mxu0 0.0
          %609 = vmatmul.mubr.f32.gmra.mrb[0].mxu0 %v533
          %v610 = vpop.f32.mrb[0].mxu0
          %v611 = vadd.f32 %v515, %v610
          %v612 = vpop.f32.mrb[0].mxu0
          %v613 = vadd.f32 %v515, %v612
          %614 = vmatprep.mubr.f32.mxu0 0.0
          %615 = vmatmul.mubr.f32.gmra.mrb[0].mxu0 %v536
          %v616 = vpop.f32.mrb[0].mxu0
          %v617 = vadd.f32 %v520, %v616
          %v618 = vpop.f32.mrb[0].mxu0
          %v619 = vadd.f32 %v520, %v618
          %620 = vmatprep.mubr.f32.mxu0 0.0
          %621 = vmatmul.mubr.f32.gmra.mrb[0].mxu0 %v539
          %v622 = vpop.f32.mrb[0].mxu0
          %v623 = vadd.f32 %v525, %v622
          %v624 = vpop.f32.mrb[0].mxu0
          %v625 = vadd.f32 %v525, %v624
          %626 = vmatprep.mubr.f32.mxu0 0.0
          %627 = vmatmul.mubr.f32.gmra.mrb[0].mxu0 %v542
          %v628 = vpop.f32.mrb[0].mxu0
          %v629 = vadd.f32 %v530, %v628
          %v630 = vpop.f32.mrb[0].mxu0
          %v631 = vadd.f32 %v530, %v630
          %632 = vdwg.mxu0
          %633 = vst [vmem:[#allocation3] sm:$0xff] %v611
          %634 = vst [vmem:[#allocation3 + $0x8] sm:$0xff] %v613
          %635 = vst [vmem:[#allocation3 + $0x10] sm:$0xff] %v617
          %636 = vst [vmem:[#allocation3 + $0x18] sm:$0xff] %v619
          %637 = vst [vmem:[#allocation3 + $0x20] sm:$0xff] %v623
          %638 = vst [vmem:[#allocation3 + $0x28] sm:$0xff] %v625
          %639 = vst [vmem:[#allocation3 + $0x30] sm:$0xff] %v629
          %640 = vst [vmem:[#allocation3 + $0x38] sm:$0xff] %v631
        $region60: #{tpu_custom_call.1} parent=51 // pred_fallthru
          _
        %v641 = vld [vmem:[%s344] sm:$0xff]
        %v642 = vld [vmem:[%s344 + $0x8] sm:$0xff]
        %v643 = vld [vmem:[%s344 + $0x10] sm:$0xff]
        %v644 = vld [vmem:[%s344 + $0x18] sm:$0xff]
        %v645 = vld [vmem:[%s344 + $0x20] sm:$0xff]
        %v646 = vld [vmem:[%s344 + $0x28] sm:$0xff]
        %v647 = vld [vmem:[%s344 + $0x30] sm:$0xff]
        %v648 = vld [vmem:[%s344 + $0x38] sm:$0xff]
        %v649 = vld [vmem:[%s2] sm:$0xf]
        %v650 = vld [vmem:[%s5] sm:$0xf]
        %652 = vset.pattern.permute.xlu0 0
        %653 = vperm.xlu0 %652, %v650
        %v654 = vpop.permute.xlu0 %653
        %vm656 = vcmask 261120
        %v658 = vsel %vm656, %v649, 0
        %660 = vmatprep.subr.mxu0 %v642
        %661 = vmatpush1.msra.mxu0 %v641
        %662 = vmatprep.subr.mxu0 %v644
        %663 = vmatpush1.msra.mxu0 %v643
        %664 = vmatprep.subr.mxu0 %v646
        %665 = vmatpush1.msra.mxu0 %v645
        %666 = vmatprep.subr.mxu0 %v648
        %667 = vmatpush1.msra.mxu0 %v647
        %668 = vmatprep.subr.mxu0 0.0
        %669 = vmatpush1.msra.mxu0 0.0
        %670 = vmatprep.subr.mxu0 0.0
        %671 = vmatpush1.msra.mxu0 0.0
        %672 = vmatprep.subr.mxu0 0.0
        %673 = vmatpush1.msra.mxu0 0.0
        %674 = vmatprep.subr.mxu0 0.0
        %675 = vmatpush1.msra.mxu0 0.0
        %676 = vmatprep.subr.mxu0 0.0
        %677 = vmatpush1.msra.mxu0 0.0
        %678 = vmatprep.subr.mxu0 0.0
        %679 = vmatpush1.msra.mxu0 0.0
        %680 = vmatprep.subr.mxu0 0.0
        %681 = vmatpush1.msra.mxu0 0.0
        %682 = vmatprep.subr.mxu0 0.0
        %683 = vmatpush1.msra.mxu0 0.0
        %684 = vmatprep.subr.mxu0 0.0
        %685 = vmatpush1.msra.mxu0 0.0
        %686 = vmatprep.subr.mxu0 0.0
        %687 = vmatpush1.msra.mxu0 0.0
        %688 = vmatprep.subr.mxu0 0.0
        %689 = vmatpush1.msra.mxu0 0.0
        %690 = vmatprep.subr.mxu0 0.0
        %691 = vmatpush1.msra.mxu0 0.0
        %692 = vmatprep.subr.mxu0 0.0
        %693 = vmatpush1.msra.mxu0 0.0
        %694 = vmatprep.subr.mxu0 0.0
        %695 = vmatpush1.msra.mxu0 0.0
        %696 = vmatprep.subr.mxu0 0.0
        %697 = vmatpush1.msra.mxu0 0.0
        %698 = vmatprep.subr.mxu0 0.0
        %699 = vmatpush1.msra.mxu0 0.0
        %700 = vmatprep.subr.mxu0 0.0
        %701 = vmatpush1.msra.mxu0 0.0
        %702 = vmatprep.subr.mxu0 0.0
        %703 = vmatpush1.msra.mxu0 0.0
        %704 = vmatprep.subr.mxu0 0.0
        %705 = vmatpush1.msra.mxu0 0.0
        %706 = vmatprep.subr.mxu0 0.0
        %707 = vmatpush1.msra.mxu0 0.0
        %708 = vmatprep.subr.mxu0 0.0
        %709 = vmatpush1.msra.mxu0 0.0
        %710 = vmatprep.subr.mxu0 0.0
        %711 = vmatpush1.msra.mxu0 0.0
        %712 = vmatprep.subr.mxu0 0.0
        %713 = vmatpush1.msra.mxu0 0.0
        %714 = vmatprep.subr.mxu0 0.0
        %715 = vmatpush1.msra.mxu0 0.0
        %716 = vmatprep.subr.mxu0 0.0
        %717 = vmatpush1.msra.mxu0 0.0
        %718 = vmatprep.subr.mxu0 0.0
        %719 = vmatpush1.msra.mxu0 0.0
        %720 = vmatprep.subr.mxu0 0.0
        %721 = vmatpush1.msra.mxu0 0.0
        %722 = vmatprep.subr.mxu0 0.0
        %723 = vmatpush1.msra.mxu0 0.0
        %724 = vmatprep.mubr.f32.mxu0 0.0
        %725 = vmatmul.mubr.f32.gmra.mrb[0].mxu0 %v658
        %v726 = vpop.f32.mrb[0].mxu0
        %v727 = vadd.f32 %v654, %v726
        %v728 = vpop.f32.mrb[0].mxu0
        %v729 = vadd.f32 %v654, %v728
        %730 = vdwg.mxu0
        %v731 = vld [vmem:[#allocation2] sm:$0xff]
        %732 = vxpose.xlu0.b32.start [1/16] %v727, 128
        %733 = vxpose.xlu0.b32.cont [2/16] 0.0, 128
        %734 = vxpose.xlu0.b32.cont [3/16] 0.0, 128
        %735 = vxpose.xlu0.b32.cont [4/16] 0.0, 128
        %736 = vxpose.xlu0.b32.cont [5/16] 0.0, 128
        %737 = vxpose.xlu0.b32.cont [6/16] 0.0, 128
        %738 = vxpose.xlu0.b32.cont [7/16] 0.0, 128
        %739 = vxpose.xlu0.b32.cont [8/16] 0.0, 128
        %740 = vxpose.xlu0.b32.cont [9/16] 0.0, 128
        %741 = vxpose.xlu0.b32.cont [10/16] 0.0, 128
        %742 = vxpose.xlu0.b32.cont [11/16] 0.0, 128
        %743 = vxpose.xlu0.b32.cont [12/16] 0.0, 128
        %744 = vxpose.xlu0.b32.cont [13/16] 0.0, 128
        %745 = vxpose.xlu0.b32.cont [14/16] 0.0, 128
        %746 = vxpose.xlu0.b32.cont [15/16] 0.0, 128
        %747 = vxpose.xlu0.b32.end [16/16] 0.0, 128
        %v748 = vpop.trf.xlu0
        %v749 = vpop.trf.xlu0
        %v750 = vpop.trf.xlu0
        %v751 = vpop.trf.xlu0
        %v752 = vpop.trf.xlu0
        %v753 = vpop.trf.xlu0
        %v754 = vpop.trf.xlu0
        %v755 = vpop.trf.xlu0
        %v756 = vpop.trf.xlu0
        %v757 = vpop.trf.xlu0
        %v758 = vpop.trf.xlu0
        %v759 = vpop.trf.xlu0
        %v760 = vpop.trf.xlu0
        %v761 = vpop.trf.xlu0
        %v762 = vpop.trf.xlu0
        %v763 = vpop.trf.xlu0
        %764 = vxpose.xlu0.b32.start [1/16] %v729, 128
        %765 = vxpose.xlu0.b32.cont [2/16] 0.0, 128
        %766 = vxpose.xlu0.b32.cont [3/16] 0.0, 128
        %767 = vxpose.xlu0.b32.cont [4/16] 0.0, 128
        %768 = vxpose.xlu0.b32.cont [5/16] 0.0, 128
        %769 = vxpose.xlu0.b32.cont [6/16] 0.0, 128
        %770 = vxpose.xlu0.b32.cont [7/16] 0.0, 128
        %771 = vxpose.xlu0.b32.cont [8/16] 0.0, 128
        %772 = vxpose.xlu0.b32.cont [9/16] 0.0, 128
        %773 = vxpose.xlu0.b32.cont [10/16] 0.0, 128
        %774 = vxpose.xlu0.b32.cont [11/16] 0.0, 128
        %775 = vxpose.xlu0.b32.cont [12/16] 0.0, 128
        %776 = vxpose.xlu0.b32.cont [13/16] 0.0, 128
        %777 = vxpose.xlu0.b32.cont [14/16] 0.0, 128
        %778 = vxpose.xlu0.b32.cont [15/16] 0.0, 128
        %779 = vxpose.xlu0.b32.end [16/16] 0.0, 128
        %v780 = vpop.trf.xlu0
        %v781 = vpop.trf.xlu0
        %v782 = vpop.trf.xlu0
        %v783 = vpop.trf.xlu0
        %v784 = vpop.trf.xlu0
        %v785 = vpop.trf.xlu0
        %v786 = vpop.trf.xlu0
        %v787 = vpop.trf.xlu0
        %v788 = vpop.trf.xlu0
        %v789 = vpop.trf.xlu0
        %v790 = vpop.trf.xlu0
        %v791 = vpop.trf.xlu0
        %v792 = vpop.trf.xlu0
        %v793 = vpop.trf.xlu0
        %v794 = vpop.trf.xlu0
        %v795 = vpop.trf.xlu0
        %v797 = vcombine.high %v731, %v731
        %vm798 = vcmask 31744
        %v800 = vsel %vm798, %v748, 0
        %v803 = vsel %vm798, %v749, 0
        %v806 = vsel %vm798, %v750, 0
        %v809 = vsel %vm798, %v751, 0
        %v812 = vsel %vm798, %v752, 0
        %v815 = vsel %vm798, %v753, 0
        %v818 = vsel %vm798, %v754, 0
        %v821 = vsel %vm798, %v755, 0
        %v824 = vsel %vm798, %v756, 0
        %v827 = vsel %vm798, %v757, 0
        %v830 = vsel %vm798, %v758, 0
        %v833 = vsel %vm798, %v759, 0
        %v836 = vsel %vm798, %v760, 0
        %v839 = vsel %vm798, %v761, 0
        %v842 = vsel %vm798, %v762, 0
        %v845 = vsel %vm798, %v763, 0
        %v848 = vsel %vm798, %v780, 0
        %v851 = vsel %vm798, %v781, 0
        %v854 = vsel %vm798, %v782, 0
        %v857 = vsel %vm798, %v783, 0
        %v860 = vsel %vm798, %v784, 0
        %v863 = vsel %vm798, %v785, 0
        %v866 = vsel %vm798, %v786, 0
        %v869 = vsel %vm798, %v787, 0
        %v872 = vsel %vm798, %v788, 0
        %v875 = vsel %vm798, %v789, 0
        %v878 = vsel %vm798, %v790, 0
        %v881 = vsel %vm798, %v791, 0
        %v884 = vsel %vm798, %v792, 0
        %v887 = vsel %vm798, %v793, 0
        %v890 = vsel %vm798, %v794, 0
        %v893 = vsel %vm798, %v795, 0
        %vm895 = vcmask 1043456
        %v896 = vsel %vm895, %v731, 0
        %v898 = vsel %vm895, %v797, 0
        %900 = vmatprep.subr.mxu0 %v898
        %901 = vmatpush1.msra.mxu0 %v896
        %902 = vmatprep.subr.mxu0 0.0
        %903 = vmatpush1.msra.mxu0 0.0
        %904 = vmatprep.subr.mxu0 0.0
        %905 = vmatpush1.msra.mxu0 0.0
        %906 = vmatprep.subr.mxu0 0.0
        %907 = vmatpush1.msra.mxu0 0.0
        %908 = vmatprep.subr.mxu0 0.0
        %909 = vmatpush1.msra.mxu0 0.0
        %910 = vmatprep.subr.mxu0 0.0
        %911 = vmatpush1.msra.mxu0 0.0
        %912 = vmatprep.subr.mxu0 0.0
        %913 = vmatpush1.msra.mxu0 0.0
        %914 = vmatprep.subr.mxu0 0.0
        %915 = vmatpush1.msra.mxu0 0.0
        %916 = vmatprep.subr.mxu0 0.0
        %917 = vmatpush1.msra.mxu0 0.0
        %918 = vmatprep.subr.mxu0 0.0
        %919 = vmatpush1.msra.mxu0 0.0
        %920 = vmatprep.subr.mxu0 0.0
        %921 = vmatpush1.msra.mxu0 0.0
        %922 = vmatprep.subr.mxu0 0.0
        %923 = vmatpush1.msra.mxu0 0.0
        %924 = vmatprep.subr.mxu0 0.0
        %925 = vmatpush1.msra.mxu0 0.0
        %926 = vmatprep.subr.mxu0 0.0
        %927 = vmatpush1.msra.mxu0 0.0
        %928 = vmatprep.subr.mxu0 0.0
        %929 = vmatpush1.msra.mxu0 0.0
        %930 = vmatprep.subr.mxu0 0.0
        %931 = vmatpush1.msra.mxu0 0.0
        %932 = vmatprep.subr.mxu0 0.0
        %933 = vmatpush1.msra.mxu0 0.0
        %934 = vmatprep.subr.mxu0 0.0
        %935 = vmatpush1.msra.mxu0 0.0
        %936 = vmatprep.subr.mxu0 0.0
        %937 = vmatpush1.msra.mxu0 0.0
        %938 = vmatprep.subr.mxu0 0.0
        %939 = vmatpush1.msra.mxu0 0.0
        %940 = vmatprep.subr.mxu0 0.0
        %941 = vmatpush1.msra.mxu0 0.0
        %942 = vmatprep.subr.mxu0 0.0
        %943 = vmatpush1.msra.mxu0 0.0
        %944 = vmatprep.subr.mxu0 0.0
        %945 = vmatpush1.msra.mxu0 0.0
        %946 = vmatprep.subr.mxu0 0.0
        %947 = vmatpush1.msra.mxu0 0.0
        %948 = vmatprep.subr.mxu0 0.0
        %949 = vmatpush1.msra.mxu0 0.0
        %950 = vmatprep.subr.mxu0 0.0
        %951 = vmatpush1.msra.mxu0 0.0
        %952 = vmatprep.subr.mxu0 0.0
        %953 = vmatpush1.msra.mxu0 0.0
        %954 = vmatprep.subr.mxu0 0.0
        %955 = vmatpush1.msra.mxu0 0.0
        %956 = vmatprep.subr.mxu0 0.0
        %957 = vmatpush1.msra.mxu0 0.0
        %958 = vmatprep.subr.mxu0 0.0
        %959 = vmatpush1.msra.mxu0 0.0
        %960 = vmatprep.subr.mxu0 0.0
        %961 = vmatpush1.msra.mxu0 0.0
        %962 = vmatprep.subr.mxu0 0.0
        %963 = vmatpush1.msra.mxu0 0.0
        %964 = vmatprep.mubr.f32.mxu0 0.0
        %965 = vmatmul.mubr.f32.gmra.mrb[0].mxu0 %v800
        %v966 = vpop.f32.mrb[0].mxu0
        %v967 = vadd.f32 0.0, %v966
        %v968 = vpop.f32.mrb[0].mxu0
        %v969 = vadd.f32 0.0, %v968
        %970 = vmatprep.mubr.f32.mxu0 0.0
        %971 = vmatmul.mubr.f32.gmra.mrb[0].mxu0 %v803
        %v972 = vpop.f32.mrb[0].mxu0
        %v973 = vadd.f32 0.0, %v972
        %v974 = vpop.f32.mrb[0].mxu0
        %v975 = vadd.f32 0.0, %v974
        %976 = vmatprep.mubr.f32.mxu0 0.0
        %977 = vmatmul.mubr.f32.gmra.mrb[0].mxu0 %v806
        %v978 = vpop.f32.mrb[0].mxu0
        %v979 = vadd.f32 0.0, %v978
        %v980 = vpop.f32.mrb[0].mxu0
        %v981 = vadd.f32 0.0, %v980
        %982 = vmatprep.mubr.f32.mxu0 0.0
        %983 = vmatmul.mubr.f32.gmra.mrb[0].mxu0 %v809
        %v984 = vpop.f32.mrb[0].mxu0
        %v985 = vadd.f32 0.0, %v984
        %v986 = vpop.f32.mrb[0].mxu0
        %v987 = vadd.f32 0.0, %v986
        %988 = vmatprep.mubr.f32.mxu0 0.0
        %989 = vmatmul.mubr.f32.gmra.mrb[0].mxu0 %v812
        %v990 = vpop.f32.mrb[0].mxu0
        %v991 = vadd.f32 0.0, %v990
        %v992 = vpop.f32.mrb[0].mxu0
        %v993 = vadd.f32 0.0, %v992
        %994 = vmatprep.mubr.f32.mxu0 0.0
        %995 = vmatmul.mubr.f32.gmra.mrb[0].mxu0 %v815
        %v996 = vpop.f32.mrb[0].mxu0
        %v997 = vadd.f32 0.0, %v996
        %v998 = vpop.f32.mrb[0].mxu0
        %v999 = vadd.f32 0.0, %v998
        %1000 = vmatprep.mubr.f32.mxu0 0.0
        %1001 = vmatmul.mubr.f32.gmra.mrb[0].mxu0 %v818
        %v1002 = vpop.f32.mrb[0].mxu0
        %v1003 = vadd.f32 0.0, %v1002
        %v1004 = vpop.f32.mrb[0].mxu0
        %v1005 = vadd.f32 0.0, %v1004
        %1006 = vmatprep.mubr.f32.mxu0 0.0
        %1007 = vmatmul.mubr.f32.gmra.mrb[0].mxu0 %v821
        %v1008 = vpop.f32.mrb[0].mxu0
        %v1009 = vadd.f32 0.0, %v1008
        %v1010 = vpop.f32.mrb[0].mxu0
        %v1011 = vadd.f32 0.0, %v1010
        %1012 = vmatprep.mubr.f32.mxu0 0.0
        %1013 = vmatmul.mubr.f32.gmra.mrb[0].mxu0 %v824
        %v1014 = vpop.f32.mrb[0].mxu0
        %v1015 = vadd.f32 0.0, %v1014
        %v1016 = vpop.f32.mrb[0].mxu0
        %v1017 = vadd.f32 0.0, %v1016
        %1018 = vmatprep.mubr.f32.mxu0 0.0
        %1019 = vmatmul.mubr.f32.gmra.mrb[0].mxu0 %v827
        %v1020 = vpop.f32.mrb[0].mxu0
        %v1021 = vadd.f32 0.0, %v1020
        %v1022 = vpop.f32.mrb[0].mxu0
        %v1023 = vadd.f32 0.0, %v1022
        %1024 = vmatprep.mubr.f32.mxu0 0.0
        %1025 = vmatmul.mubr.f32.gmra.mrb[0].mxu0 %v830
        %v1026 = vpop.f32.mrb[0].mxu0
        %v1027 = vadd.f32 0.0, %v1026
        %v1028 = vpop.f32.mrb[0].mxu0
        %v1029 = vadd.f32 0.0, %v1028
        %1030 = vmatprep.mubr.f32.mxu0 0.0
        %1031 = vmatmul.mubr.f32.gmra.mrb[0].mxu0 %v833
        %v1032 = vpop.f32.mrb[0].mxu0
        %v1033 = vadd.f32 0.0, %v1032
        %v1034 = vpop.f32.mrb[0].mxu0
        %v1035 = vadd.f32 0.0, %v1034
        %1036 = vmatprep.mubr.f32.mxu0 0.0
        %1037 = vmatmul.mubr.f32.gmra.mrb[0].mxu0 %v836
        %v1038 = vpop.f32.mrb[0].mxu0
        %v1039 = vadd.f32 0.0, %v1038
        %v1040 = vpop.f32.mrb[0].mxu0
        %v1041 = vadd.f32 0.0, %v1040
        %1042 = vmatprep.mubr.f32.mxu0 0.0
        %1043 = vmatmul.mubr.f32.gmra.mrb[0].mxu0 %v839
        %v1044 = vpop.f32.mrb[0].mxu0
        %v1045 = vadd.f32 0.0, %v1044
        %v1046 = vpop.f32.mrb[0].mxu0
        %v1047 = vadd.f32 0.0, %v1046
        %1048 = vmatprep.mubr.f32.mxu0 0.0
        %1049 = vmatmul.mubr.f32.gmra.mrb[0].mxu0 %v842
        %v1050 = vpop.f32.mrb[0].mxu0
        %v1051 = vadd.f32 0.0, %v1050
        %v1052 = vpop.f32.mrb[0].mxu0
        %v1053 = vadd.f32 0.0, %v1052
        %1054 = vmatprep.mubr.f32.mxu0 0.0
        %1055 = vmatmul.mubr.f32.gmra.mrb[0].mxu0 %v845
        %v1056 = vpop.f32.mrb[0].mxu0
        %v1057 = vadd.f32 0.0, %v1056
        %v1058 = vpop.f32.mrb[0].mxu0
        %v1059 = vadd.f32 0.0, %v1058
        %1060 = vmatprep.mubr.f32.mxu0 0.0
        %1061 = vmatmul.mubr.f32.gmra.mrb[0].mxu0 %v848
        %v1062 = vpop.f32.mrb[0].mxu0
        %v1063 = vadd.f32 0.0, %v1062
        %v1064 = vpop.f32.mrb[0].mxu0
        %v1065 = vadd.f32 0.0, %v1064
        %1066 = vmatprep.mubr.f32.mxu0 0.0
        %1067 = vmatmul.mubr.f32.gmra.mrb[0].mxu0 %v851
        %v1068 = vpop.f32.mrb[0].mxu0
        %v1069 = vadd.f32 0.0, %v1068
        %v1070 = vpop.f32.mrb[0].mxu0
        %v1071 = vadd.f32 0.0, %v1070
        %1072 = vmatprep.mubr.f32.mxu0 0.0
        %1073 = vmatmul.mubr.f32.gmra.mrb[0].mxu0 %v854
        %v1074 = vpop.f32.mrb[0].mxu0
        %v1075 = vadd.f32 0.0, %v1074
        %v1076 = vpop.f32.mrb[0].mxu0
        %v1077 = vadd.f32 0.0, %v1076
        %1078 = vmatprep.mubr.f32.mxu0 0.0
        %1079 = vmatmul.mubr.f32.gmra.mrb[0].mxu0 %v857
        %v1080 = vpop.f32.mrb[0].mxu0
        %v1081 = vadd.f32 0.0, %v1080
        %v1082 = vpop.f32.mrb[0].mxu0
        %v1083 = vadd.f32 0.0, %v1082
        %1084 = vmatprep.mubr.f32.mxu0 0.0
        %1085 = vmatmul.mubr.f32.gmra.mrb[0].mxu0 %v860
        %v1086 = vpop.f32.mrb[0].mxu0
        %v1087 = vadd.f32 0.0, %v1086
        %v1088 = vpop.f32.mrb[0].mxu0
        %v1089 = vadd.f32 0.0, %v1088
        %1090 = vmatprep.mubr.f32.mxu0 0.0
        %1091 = vmatmul.mubr.f32.gmra.mrb[0].mxu0 %v863
        %v1092 = vpop.f32.mrb[0].mxu0
        %v1093 = vadd.f32 0.0, %v1092
        %v1094 = vpop.f32.mrb[0].mxu0
        %v1095 = vadd.f32 0.0, %v1094
        %1096 = vmatprep.mubr.f32.mxu0 0.0
        %1097 = vmatmul.mubr.f32.gmra.mrb[0].mxu0 %v866
        %v1098 = vpop.f32.mrb[0].mxu0
        %v1099 = vadd.f32 0.0, %v1098
        %v1100 = vpop.f32.mrb[0].mxu0
        %v1101 = vadd.f32 0.0, %v1100
        %1102 = vmatprep.mubr.f32.mxu0 0.0
        %1103 = vmatmul.mubr.f32.gmra.mrb[0].mxu0 %v869
        %v1104 = vpop.f32.mrb[0].mxu0
        %v1105 = vadd.f32 0.0, %v1104
        %v1106 = vpop.f32.mrb[0].mxu0
        %v1107 = vadd.f32 0.0, %v1106
        %1108 = vmatprep.mubr.f32.mxu0 0.0
        %1109 = vmatmul.mubr.f32.gmra.mrb[0].mxu0 %v872
        %v1110 = vpop.f32.mrb[0].mxu0
        %v1111 = vadd.f32 0.0, %v1110
        %v1112 = vpop.f32.mrb[0].mxu0
        %v1113 = vadd.f32 0.0, %v1112
        %1114 = vmatprep.mubr.f32.mxu0 0.0
        %1115 = vmatmul.mubr.f32.gmra.mrb[0].mxu0 %v875
        %v1116 = vpop.f32.mrb[0].mxu0
        %v1117 = vadd.f32 0.0, %v1116
        %v1118 = vpop.f32.mrb[0].mxu0
        %v1119 = vadd.f32 0.0, %v1118
        %1120 = vmatprep.mubr.f32.mxu0 0.0
        %1121 = vmatmul.mubr.f32.gmra.mrb[0].mxu0 %v878
        %v1122 = vpop.f32.mrb[0].mxu0
        %v1123 = vadd.f32 0.0, %v1122
        %v1124 = vpop.f32.mrb[0].mxu0
        %v1125 = vadd.f32 0.0, %v1124
        %1126 = vmatprep.mubr.f32.mxu0 0.0
        %1127 = vmatmul.mubr.f32.gmra.mrb[0].mxu0 %v881
        %v1128 = vpop.f32.mrb[0].mxu0
        %v1129 = vadd.f32 0.0, %v1128
        %v1130 = vpop.f32.mrb[0].mxu0
        %v1131 = vadd.f32 0.0, %v1130
        %1132 = vmatprep.mubr.f32.mxu0 0.0
        %1133 = vmatmul.mubr.f32.gmra.mrb[0].mxu0 %v884
        %v1134 = vpop.f32.mrb[0].mxu0
        %v1135 = vadd.f32 0.0, %v1134
        %v1136 = vpop.f32.mrb[0].mxu0
        %v1137 = vadd.f32 0.0, %v1136
        %1138 = vmatprep.mubr.f32.mxu0 0.0
        %1139 = vmatmul.mubr.f32.gmra.mrb[0].mxu0 %v887
        %v1140 = vpop.f32.mrb[0].mxu0
        %v1141 = vadd.f32 0.0, %v1140
        %v1142 = vpop.f32.mrb[0].mxu0
        %v1143 = vadd.f32 0.0, %v1142
        %1144 = vmatprep.mubr.f32.mxu0 0.0
        %1145 = vmatmul.mubr.f32.gmra.mrb[0].mxu0 %v890
        %v1146 = vpop.f32.mrb[0].mxu0
        %v1147 = vadd.f32 0.0, %v1146
        %v1148 = vpop.f32.mrb[0].mxu0
        %v1149 = vadd.f32 0.0, %v1148
        %1150 = vmatprep.mubr.f32.mxu0 0.0
        %1151 = vmatmul.mubr.f32.gmra.mrb[0].mxu0 %v893
        %v1152 = vpop.f32.mrb[0].mxu0
        %v1153 = vadd.f32 0.0, %v1152
        %v1154 = vpop.f32.mrb[0].mxu0
        %v1155 = vadd.f32 0.0, %v1154
        %1156 = vdwg.mxu0
        %v1157 = vmax.f32 %v967, %v969
        %1158 = vmax.xlane.f32.xlu0 %v1157
        %v1159 = vpop.xlane.xlu0 %1158
        %v1160 = vmax.f32 %v973, %v975
        %1161 = vmax.xlane.f32.xlu0 %v1160
        %v1162 = vpop.xlane.xlu0 %1161
        %v1163 = vmax.f32 %v979, %v981
        %1164 = vmax.xlane.f32.xlu0 %v1163
        %v1165 = vpop.xlane.xlu0 %1164
        %v1166 = vmax.f32 %v985, %v987
        %1167 = vmax.xlane.f32.xlu0 %v1166
        %v1168 = vpop.xlane.xlu0 %1167
        %v1169 = vmax.f32 %v991, %v993
        %1170 = vmax.xlane.f32.xlu0 %v1169
        %v1171 = vpop.xlane.xlu0 %1170
        %v1172 = vmax.f32 %v997, %v999
        %1173 = vmax.xlane.f32.xlu0 %v1172
        %v1174 = vpop.xlane.xlu0 %1173
        %v1175 = vmax.f32 %v1003, %v1005
        %1176 = vmax.xlane.f32.xlu0 %v1175
        %v1177 = vpop.xlane.xlu0 %1176
        %v1178 = vmax.f32 %v1009, %v1011
        %1179 = vmax.xlane.f32.xlu0 %v1178
        %v1180 = vpop.xlane.xlu0 %1179
        %v1181 = vmax.f32 %v1015, %v1017
        %1182 = vmax.xlane.f32.xlu0 %v1181
        %v1183 = vpop.xlane.xlu0 %1182
        %v1184 = vmax.f32 %v1021, %v1023
        %1185 = vmax.xlane.f32.xlu0 %v1184
        %v1186 = vpop.xlane.xlu0 %1185
        %v1187 = vmax.f32 %v1027, %v1029
        %1188 = vmax.xlane.f32.xlu0 %v1187
        %v1189 = vpop.xlane.xlu0 %1188
        %v1190 = vmax.f32 %v1033, %v1035
        %1191 = vmax.xlane.f32.xlu0 %v1190
        %v1192 = vpop.xlane.xlu0 %1191
        %v1193 = vmax.f32 %v1039, %v1041
        %1194 = vmax.xlane.f32.xlu0 %v1193
        %v1195 = vpop.xlane.xlu0 %1194
        %v1196 = vmax.f32 %v1045, %v1047
        %1197 = vmax.xlane.f32.xlu0 %v1196
        %v1198 = vpop.xlane.xlu0 %1197
        %v1199 = vmax.f32 %v1051, %v1053
        %1200 = vmax.xlane.f32.xlu0 %v1199
        %v1201 = vpop.xlane.xlu0 %1200
        %v1202 = vmax.f32 %v1057, %v1059
        %1203 = vmax.xlane.f32.xlu0 %v1202
        %v1204 = vpop.xlane.xlu0 %1203
        %v1205 = vmax.f32 %v1063, %v1065
        %1206 = vmax.xlane.f32.xlu0 %v1205
        %v1207 = vpop.xlane.xlu0 %1206
        %v1208 = vmax.f32 %v1069, %v1071
        %1209 = vmax.xlane.f32.xlu0 %v1208
        %v1210 = vpop.xlane.xlu0 %1209
        %v1211 = vmax.f32 %v1075, %v1077
        %1212 = vmax.xlane.f32.xlu0 %v1211
        %v1213 = vpop.xlane.xlu0 %1212
        %v1214 = vmax.f32 %v1081, %v1083
        %1215 = vmax.xlane.f32.xlu0 %v1214
        %v1216 = vpop.xlane.xlu0 %1215
        %v1217 = vmax.f32 %v1087, %v1089
        %1218 = vmax.xlane.f32.xlu0 %v1217
        %v1219 = vpop.xlane.xlu0 %1218
        %v1220 = vmax.f32 %v1093, %v1095
        %1221 = vmax.xlane.f32.xlu0 %v1220
        %v1222 = vpop.xlane.xlu0 %1221
        %v1223 = vmax.f32 %v1099, %v1101
        %1224 = vmax.xlane.f32.xlu0 %v1223
        %v1225 = vpop.xlane.xlu0 %1224
        %v1226 = vmax.f32 %v1105, %v1107
        %1227 = vmax.xlane.f32.xlu0 %v1226
        %v1228 = vpop.xlane.xlu0 %1227
        %v1229 = vmax.f32 %v1111, %v1113
        %1230 = vmax.xlane.f32.xlu0 %v1229
        %v1231 = vpop.xlane.xlu0 %1230
        %v1232 = vmax.f32 %v1117, %v1119
        %1233 = vmax.xlane.f32.xlu0 %v1232
        %v1234 = vpop.xlane.xlu0 %1233
        %v1235 = vmax.f32 %v1123, %v1125
        %1236 = vmax.xlane.f32.xlu0 %v1235
        %v1237 = vpop.xlane.xlu0 %1236
        %v1238 = vmax.f32 %v1129, %v1131
        %1239 = vmax.xlane.f32.xlu0 %v1238
        %v1240 = vpop.xlane.xlu0 %1239
        %v1241 = vmax.f32 %v1135, %v1137
        %1242 = vmax.xlane.f32.xlu0 %v1241
        %v1243 = vpop.xlane.xlu0 %1242
        %v1244 = vmax.f32 %v1141, %v1143
        %1245 = vmax.xlane.f32.xlu0 %v1244
        %v1246 = vpop.xlane.xlu0 %1245
        %v1247 = vmax.f32 %v1147, %v1149
        %1248 = vmax.xlane.f32.xlu0 %v1247
        %v1249 = vpop.xlane.xlu0 %1248
        %v1250 = vmax.f32 %v1153, %v1155
        %1251 = vmax.xlane.f32.xlu0 %v1250
        %v1252 = vpop.xlane.xlu0 %1251
        %v1253 = vsub.f32 %v967, %v1159
        %v1254 = vsub.f32 %v969, %v1159
        %v1255 = vsub.f32 %v973, %v1162
        %v1256 = vsub.f32 %v975, %v1162
        %v1257 = vsub.f32 %v979, %v1165
        %v1258 = vsub.f32 %v981, %v1165
        %v1259 = vsub.f32 %v985, %v1168
        %v1260 = vsub.f32 %v987, %v1168
        %v1261 = vsub.f32 %v991, %v1171
        %v1262 = vsub.f32 %v993, %v1171
        %v1263 = vsub.f32 %v997, %v1174
        %v1264 = vsub.f32 %v999, %v1174
        %v1265 = vsub.f32 %v1003, %v1177
        %v1266 = vsub.f32 %v1005, %v1177
        %v1267 = vsub.f32 %v1009, %v1180
        %v1268 = vsub.f32 %v1011, %v1180
        %v1269 = vsub.f32 %v1015, %v1183
        %v1270 = vsub.f32 %v1017, %v1183
        %v1271 = vsub.f32 %v1021, %v1186
        %v1272 = vsub.f32 %v1023, %v1186
        %v1273 = vsub.f32 %v1027, %v1189
        %v1274 = vsub.f32 %v1029, %v1189
        %v1275 = vsub.f32 %v1033, %v1192
        %v1276 = vsub.f32 %v1035, %v1192
        %v1277 = vsub.f32 %v1039, %v1195
        %v1278 = vsub.f32 %v1041, %v1195
        %v1279 = vsub.f32 %v1045, %v1198
        %v1280 = vsub.f32 %v1047, %v1198
        %v1281 = vsub.f32 %v1051, %v1201
        %v1282 = vsub.f32 %v1053, %v1201
        %v1283 = vsub.f32 %v1057, %v1204
        %v1284 = vsub.f32 %v1059, %v1204
        %v1285 = vsub.f32 %v1063, %v1207
        %v1286 = vsub.f32 %v1065, %v1207
        %v1287 = vsub.f32 %v1069, %v1210
        %v1288 = vsub.f32 %v1071, %v1210
        %v1289 = vsub.f32 %v1075, %v1213
        %v1290 = vsub.f32 %v1077, %v1213
        %v1291 = vsub.f32 %v1081, %v1216
        %v1292 = vsub.f32 %v1083, %v1216
        %v1293 = vsub.f32 %v1087, %v1219
        %v1294 = vsub.f32 %v1089, %v1219
        %v1295 = vsub.f32 %v1093, %v1222
        %v1296 = vsub.f32 %v1095, %v1222
        %v1297 = vsub.f32 %v1099, %v1225
        %v1298 = vsub.f32 %v1101, %v1225
        %v1299 = vsub.f32 %v1105, %v1228
        %v1300 = vsub.f32 %v1107, %v1228
        %v1301 = vsub.f32 %v1111, %v1231
        %v1302 = vsub.f32 %v1113, %v1231
        %v1303 = vsub.f32 %v1117, %v1234
        %v1304 = vsub.f32 %v1119, %v1234
        %v1305 = vsub.f32 %v1123, %v1237
        %v1306 = vsub.f32 %v1125, %v1237
        %v1307 = vsub.f32 %v1129, %v1240
        %v1308 = vsub.f32 %v1131, %v1240
        %v1309 = vsub.f32 %v1135, %v1243
        %v1310 = vsub.f32 %v1137, %v1243
        %v1311 = vsub.f32 %v1141, %v1246
        %v1312 = vsub.f32 %v1143, %v1246
        %v1313 = vsub.f32 %v1147, %v1249
        %v1314 = vsub.f32 %v1149, %v1249
        %v1315 = vsub.f32 %v1153, %v1252
        %v1316 = vsub.f32 %v1155, %v1252
        %v1317 = vmul.f32 %v1253, 1.442695
        %v1318 = vpow.pop %v1317
        %v1319 = vmul.f32 %v1254, 1.442695
        %v1320 = vpow.pop %v1319
        %v1321 = vmul.f32 %v1255, 1.442695
        %v1322 = vpow.pop %v1321
        %v1323 = vmul.f32 %v1256, 1.442695
        %v1324 = vpow.pop %v1323
        %v1325 = vmul.f32 %v1257, 1.442695
        %v1326 = vpow.pop %v1325
        %v1327 = vmul.f32 %v1258, 1.442695
        %v1328 = vpow.pop %v1327
        %v1329 = vmul.f32 %v1259, 1.442695
        %v1330 = vpow.pop %v1329
        %v1331 = vmul.f32 %v1260, 1.442695
        %v1332 = vpow.pop %v1331
        %v1333 = vmul.f32 %v1261, 1.442695
        %v1334 = vpow.pop %v1333
        %v1335 = vmul.f32 %v1262, 1.442695
        %v1336 = vpow.pop %v1335
        %v1337 = vmul.f32 %v1263, 1.442695
        %v1338 = vpow.pop %v1337
        %v1339 = vmul.f32 %v1264, 1.442695
        %v1340 = vpow.pop %v1339
        %v1341 = vmul.f32 %v1265, 1.442695
        %v1342 = vpow.pop %v1341
        %v1343 = vmul.f32 %v1266, 1.442695
        %v1344 = vpow.pop %v1343
        %v1345 = vmul.f32 %v1267, 1.442695
        %v1346 = vpow.pop %v1345
        %v1347 = vmul.f32 %v1268, 1.442695
        %v1348 = vpow.pop %v1347
        %v1349 = vmul.f32 %v1269, 1.442695
        %v1350 = vpow.pop %v1349
        %v1351 = vmul.f32 %v1270, 1.442695
        %v1352 = vpow.pop %v1351
        %v1353 = vmul.f32 %v1271, 1.442695
        %v1354 = vpow.pop %v1353
        %v1355 = vmul.f32 %v1272, 1.442695
        %v1356 = vpow.pop %v1355
        %v1357 = vmul.f32 %v1273, 1.442695
        %v1358 = vpow.pop %v1357
        %v1359 = vmul.f32 %v1274, 1.442695
        %v1360 = vpow.pop %v1359
        %v1361 = vmul.f32 %v1275, 1.442695
        %v1362 = vpow.pop %v1361
        %v1363 = vmul.f32 %v1276, 1.442695
        %v1364 = vpow.pop %v1363
        %v1365 = vmul.f32 %v1277, 1.442695
        %v1366 = vpow.pop %v1365
        %v1367 = vmul.f32 %v1278, 1.442695
        %v1368 = vpow.pop %v1367
        %v1369 = vmul.f32 %v1279, 1.442695
        %v1370 = vpow.pop %v1369
        %v1371 = vmul.f32 %v1280, 1.442695
        %v1372 = vpow.pop %v1371
        %v1373 = vmul.f32 %v1281, 1.442695
        %v1374 = vpow.pop %v1373
        %v1375 = vmul.f32 %v1282, 1.442695
        %v1376 = vpow.pop %v1375
        %v1377 = vmul.f32 %v1283, 1.442695
        %v1378 = vpow.pop %v1377
        %v1379 = vmul.f32 %v1284, 1.442695
        %v1380 = vpow.pop %v1379
        %v1381 = vmul.f32 %v1285, 1.442695
        %v1382 = vpow.pop %v1381
        %v1383 = vmul.f32 %v1286, 1.442695
        %v1384 = vpow.pop %v1383
        %v1385 = vmul.f32 %v1287, 1.442695
        %v1386 = vpow.pop %v1385
        %v1387 = vmul.f32 %v1288, 1.442695
        %v1388 = vpow.pop %v1387
        %v1389 = vmul.f32 %v1289, 1.442695
        %v1390 = vpow.pop %v1389
        %v1391 = vmul.f32 %v1290, 1.442695
        %v1392 = vpow.pop %v1391
        %v1393 = vmul.f32 %v1291, 1.442695
        %v1394 = vpow.pop %v1393
        %v1395 = vmul.f32 %v1292, 1.442695
        %v1396 = vpow.pop %v1395
        %v1397 = vmul.f32 %v1293, 1.442695
        %v1398 = vpow.pop %v1397
        %v1399 = vmul.f32 %v1294, 1.442695
        %v1400 = vpow.pop %v1399
        %v1401 = vmul.f32 %v1295, 1.442695
        %v1402 = vpow.pop %v1401
        %v1403 = vmul.f32 %v1296, 1.442695
        %v1404 = vpow.pop %v1403
        %v1405 = vmul.f32 %v1297, 1.442695
        %v1406 = vpow.pop %v1405
        %v1407 = vmul.f32 %v1298, 1.442695
        %v1408 = vpow.pop %v1407
        %v1409 = vmul.f32 %v1299, 1.442695
        %v1410 = vpow.pop %v1409
        %v1411 = vmul.f32 %v1300, 1.442695
        %v1412 = vpow.pop %v1411
        %v1413 = vmul.f32 %v1301, 1.442695
        %v1414 = vpow.pop %v1413
        %v1415 = vmul.f32 %v1302, 1.442695
        %v1416 = vpow.pop %v1415
        %v1417 = vmul.f32 %v1303, 1.442695
        %v1418 = vpow.pop %v1417
        %v1419 = vmul.f32 %v1304, 1.442695
        %v1420 = vpow.pop %v1419
        %v1421 = vmul.f32 %v1305, 1.442695
        %v1422 = vpow.pop %v1421
        %v1423 = vmul.f32 %v1306, 1.442695
        %v1424 = vpow.pop %v1423
        %v1425 = vmul.f32 %v1307, 1.442695
        %v1426 = vpow.pop %v1425
        %v1427 = vmul.f32 %v1308, 1.442695
        %v1428 = vpow.pop %v1427
        %v1429 = vmul.f32 %v1309, 1.442695
        %v1430 = vpow.pop %v1429
        %v1431 = vmul.f32 %v1310, 1.442695
        %v1432 = vpow.pop %v1431
        %v1433 = vmul.f32 %v1311, 1.442695
        %v1434 = vpow.pop %v1433
        %v1435 = vmul.f32 %v1312, 1.442695
        %v1436 = vpow.pop %v1435
        %v1437 = vmul.f32 %v1313, 1.442695
        %v1438 = vpow.pop %v1437
        %v1439 = vmul.f32 %v1314, 1.442695
        %v1440 = vpow.pop %v1439
        %v1441 = vmul.f32 %v1315, 1.442695
        %v1442 = vpow.pop %v1441
        %v1443 = vmul.f32 %v1316, 1.442695
        %v1444 = vpow.pop %v1443
        %v1445 = vadd.f32 %v1318, %v1320
        %1446 = vadd.xlane.f32.xlu0 %v1445
        %v1447 = vpop.xlane.xlu0 %1446
        %v1448 = vadd.f32 %v1322, %v1324
        %1449 = vadd.xlane.f32.xlu0 %v1448
        %v1450 = vpop.xlane.xlu0 %1449
        %v1451 = vadd.f32 %v1326, %v1328
        %1452 = vadd.xlane.f32.xlu0 %v1451
        %v1453 = vpop.xlane.xlu0 %1452
        %v1454 = vadd.f32 %v1330, %v1332
        %1455 = vadd.xlane.f32.xlu0 %v1454
        %v1456 = vpop.xlane.xlu0 %1455
        %v1457 = vadd.f32 %v1334, %v1336
        %1458 = vadd.xlane.f32.xlu0 %v1457
        %v1459 = vpop.xlane.xlu0 %1458
        %v1460 = vadd.f32 %v1338, %v1340
        %1461 = vadd.xlane.f32.xlu0 %v1460
        %v1462 = vpop.xlane.xlu0 %1461
        %v1463 = vadd.f32 %v1342, %v1344
        %1464 = vadd.xlane.f32.xlu0 %v1463
        %v1465 = vpop.xlane.xlu0 %1464
        %v1466 = vadd.f32 %v1346, %v1348
        %1467 = vadd.xlane.f32.xlu0 %v1466
        %v1468 = vpop.xlane.xlu0 %1467
        %v1469 = vadd.f32 %v1350, %v1352
        %1470 = vadd.xlane.f32.xlu0 %v1469
        %v1471 = vpop.xlane.xlu0 %1470
        %v1472 = vadd.f32 %v1354, %v1356
        %1473 = vadd.xlane.f32.xlu0 %v1472
        %v1474 = vpop.xlane.xlu0 %1473
        %v1475 = vadd.f32 %v1358, %v1360
        %1476 = vadd.xlane.f32.xlu0 %v1475
        %v1477 = vpop.xlane.xlu0 %1476
        %v1478 = vadd.f32 %v1362, %v1364
        %1479 = vadd.xlane.f32.xlu0 %v1478
        %v1480 = vpop.xlane.xlu0 %1479
        %v1481 = vadd.f32 %v1366, %v1368
        %1482 = vadd.xlane.f32.xlu0 %v1481
        %v1483 = vpop.xlane.xlu0 %1482
        %v1484 = vadd.f32 %v1370, %v1372
        %1485 = vadd.xlane.f32.xlu0 %v1484
        %v1486 = vpop.xlane.xlu0 %1485
        %v1487 = vadd.f32 %v1374, %v1376
        %1488 = vadd.xlane.f32.xlu0 %v1487
        %v1489 = vpop.xlane.xlu0 %1488
        %v1490 = vadd.f32 %v1378, %v1380
        %1491 = vadd.xlane.f32.xlu0 %v1490
        %v1492 = vpop.xlane.xlu0 %1491
        %v1493 = vadd.f32 %v1382, %v1384
        %1494 = vadd.xlane.f32.xlu0 %v1493
        %v1495 = vpop.xlane.xlu0 %1494
        %v1496 = vadd.f32 %v1386, %v1388
        %1497 = vadd.xlane.f32.xlu0 %v1496
        %v1498 = vpop.xlane.xlu0 %1497
        %v1499 = vadd.f32 %v1390, %v1392
        %1500 = vadd.xlane.f32.xlu0 %v1499
        %v1501 = vpop.xlane.xlu0 %1500
        %v1502 = vadd.f32 %v1394, %v1396
        %1503 = vadd.xlane.f32.xlu0 %v1502
        %v1504 = vpop.xlane.xlu0 %1503
        %v1505 = vadd.f32 %v1398, %v1400
        %1506 = vadd.xlane.f32.xlu0 %v1505
        %v1507 = vpop.xlane.xlu0 %1506
        %v1508 = vadd.f32 %v1402, %v1404
        %1509 = vadd.xlane.f32.xlu0 %v1508
        %v1510 = vpop.xlane.xlu0 %1509
        %v1511 = vadd.f32 %v1406, %v1408
        %1512 = vadd.xlane.f32.xlu0 %v1511
        %v1513 = vpop.xlane.xlu0 %1512
        %v1514 = vadd.f32 %v1410, %v1412
        %1515 = vadd.xlane.f32.xlu0 %v1514
        %v1516 = vpop.xlane.xlu0 %1515
        %v1517 = vadd.f32 %v1414, %v1416
        %1518 = vadd.xlane.f32.xlu0 %v1517
        %v1519 = vpop.xlane.xlu0 %1518
        %v1520 = vadd.f32 %v1418, %v1420
        %1521 = vadd.xlane.f32.xlu0 %v1520
        %v1522 = vpop.xlane.xlu0 %1521
        %v1523 = vadd.f32 %v1422, %v1424
        %1524 = vadd.xlane.f32.xlu0 %v1523
        %v1525 = vpop.xlane.xlu0 %1524
        %v1526 = vadd.f32 %v1426, %v1428
        %1527 = vadd.xlane.f32.xlu0 %v1526
        %v1528 = vpop.xlane.xlu0 %1527
        %v1529 = vadd.f32 %v1430, %v1432
        %1530 = vadd.xlane.f32.xlu0 %v1529
        %v1531 = vpop.xlane.xlu0 %1530
        %v1532 = vadd.f32 %v1434, %v1436
        %1533 = vadd.xlane.f32.xlu0 %v1532
        %v1534 = vpop.xlane.xlu0 %1533
        %v1535 = vadd.f32 %v1438, %v1440
        %1536 = vadd.xlane.f32.xlu0 %v1535
        %v1537 = vpop.xlane.xlu0 %1536
        %v1538 = vadd.f32 %v1442, %v1444
        %1539 = vadd.xlane.f32.xlu0 %v1538
        %v1540 = vpop.xlane.xlu0 %1539
        %v1541 = vrcp.pop %v1447
        %v1542 = vrcp.pop %v1450
        %v1543 = vrcp.pop %v1453
        %v1544 = vrcp.pop %v1456
        %v1545 = vrcp.pop %v1459
        %v1546 = vrcp.pop %v1462
        %v1547 = vrcp.pop %v1465
        %v1548 = vrcp.pop %v1468
        %v1549 = vrcp.pop %v1471
        %v1550 = vrcp.pop %v1474
        %v1551 = vrcp.pop %v1477
        %v1552 = vrcp.pop %v1480
        %v1553 = vrcp.pop %v1483
        %v1554 = vrcp.pop %v1486
        %v1555 = vrcp.pop %v1489
        %v1556 = vrcp.pop %v1492
        %v1557 = vrcp.pop %v1495
        %v1558 = vrcp.pop %v1498
        %v1559 = vrcp.pop %v1501
        %v1560 = vrcp.pop %v1504
        %v1561 = vrcp.pop %v1507
        %v1562 = vrcp.pop %v1510
        %v1563 = vrcp.pop %v1513
        %v1564 = vrcp.pop %v1516
        %v1565 = vrcp.pop %v1519
        %v1566 = vrcp.pop %v1522
        %v1567 = vrcp.pop %v1525
        %v1568 = vrcp.pop %v1528
        %v1569 = vrcp.pop %v1531
        %v1570 = vrcp.pop %v1534
        %v1571 = vrcp.pop %v1537
        %v1572 = vrcp.pop %v1540
        %v1573 = vmul.f32 %v1318, %v1541
        %v1574 = vmul.f32 %v1320, %v1541
        %v1575 = vmul.f32 %v1322, %v1542
        %v1576 = vmul.f32 %v1324, %v1542
        %v1577 = vmul.f32 %v1326, %v1543
        %v1578 = vmul.f32 %v1328, %v1543
        %v1579 = vmul.f32 %v1330, %v1544
        %v1580 = vmul.f32 %v1332, %v1544
        %v1581 = vmul.f32 %v1334, %v1545
        %v1582 = vmul.f32 %v1336, %v1545
        %v1583 = vmul.f32 %v1338, %v1546
        %v1584 = vmul.f32 %v1340, %v1546
        %v1585 = vmul.f32 %v1342, %v1547
        %v1586 = vmul.f32 %v1344, %v1547
        %v1587 = vmul.f32 %v1346, %v1548
        %v1588 = vmul.f32 %v1348, %v1548
        %v1589 = vmul.f32 %v1350, %v1549
        %v1590 = vmul.f32 %v1352, %v1549
        %v1591 = vmul.f32 %v1354, %v1550
        %v1592 = vmul.f32 %v1356, %v1550
        %v1593 = vmul.f32 %v1358, %v1551
        %v1594 = vmul.f32 %v1360, %v1551
        %v1595 = vmul.f32 %v1362, %v1552
        %v1596 = vmul.f32 %v1364, %v1552
        %v1597 = vmul.f32 %v1366, %v1553
        %v1598 = vmul.f32 %v1368, %v1553
        %v1599 = vmul.f32 %v1370, %v1554
        %v1600 = vmul.f32 %v1372, %v1554
        %v1601 = vmul.f32 %v1374, %v1555
        %v1602 = vmul.f32 %v1376, %v1555
        %v1603 = vmul.f32 %v1378, %v1556
        %v1604 = vmul.f32 %v1380, %v1556
        %v1605 = vmul.f32 %v1382, %v1557
        %v1606 = vmul.f32 %v1384, %v1557
        %v1607 = vmul.f32 %v1386, %v1558
        %v1608 = vmul.f32 %v1388, %v1558
        %v1609 = vmul.f32 %v1390, %v1559
        %v1610 = vmul.f32 %v1392, %v1559
        %v1611 = vmul.f32 %v1394, %v1560
        %v1612 = vmul.f32 %v1396, %v1560
        %v1613 = vmul.f32 %v1398, %v1561
        %v1614 = vmul.f32 %v1400, %v1561
        %v1615 = vmul.f32 %v1402, %v1562
        %v1616 = vmul.f32 %v1404, %v1562
        %v1617 = vmul.f32 %v1406, %v1563
        %v1618 = vmul.f32 %v1408, %v1563
        %v1619 = vmul.f32 %v1410, %v1564
        %v1620 = vmul.f32 %v1412, %v1564
        %v1621 = vmul.f32 %v1414, %v1565
        %v1622 = vmul.f32 %v1416, %v1565
        %v1623 = vmul.f32 %v1418, %v1566
        %v1624 = vmul.f32 %v1420, %v1566
        %v1625 = vmul.f32 %v1422, %v1567
        %v1626 = vmul.f32 %v1424, %v1567
        %v1627 = vmul.f32 %v1426, %v1568
        %v1628 = vmul.f32 %v1428, %v1568
        %v1629 = vmul.f32 %v1430, %v1569
        %v1630 = vmul.f32 %v1432, %v1569
        %v1631 = vmul.f32 %v1434, %v1570
        %v1632 = vmul.f32 %v1436, %v1570
        %v1633 = vmul.f32 %v1438, %v1571
        %v1634 = vmul.f32 %v1440, %v1571
        %v1635 = vmul.f32 %v1442, %v1572
        %v1636 = vmul.f32 %v1444, %v1572
        %v1637 = vld [vmem:[#allocation3] sm:$0xff]
        %v1638 = vld [vmem:[#allocation3 + $0x8] sm:$0xff]
        %v1639 = vld [vmem:[#allocation3 + $0x10] sm:$0xff]
        %v1640 = vld [vmem:[#allocation3 + $0x18] sm:$0xff]
        %v1641 = vld [vmem:[#allocation3 + $0x20] sm:$0xff]
        %v1642 = vld [vmem:[#allocation3 + $0x28] sm:$0xff]
        %v1643 = vld [vmem:[#allocation3 + $0x30] sm:$0xff]
        %v1644 = vld [vmem:[#allocation3 + $0x38] sm:$0xff]
        %1645 = vmatprep.subr.mxu0 %v1574
        %1646 = vmatpush1.xpose.msra.mxu0 %v1573
        %1647 = vmatprep.subr.mxu0 %v1576
        %1648 = vmatpush1.xpose.msra.mxu0 %v1575
        %1649 = vmatprep.subr.mxu0 %v1578
        %1650 = vmatpush1.xpose.msra.mxu0 %v1577
        %1651 = vmatprep.subr.mxu0 %v1580
        %1652 = vmatpush1.xpose.msra.mxu0 %v1579
        %1653 = vmatprep.subr.mxu0 %v1582
        %1654 = vmatpush1.xpose.msra.mxu0 %v1581
        %1655 = vmatprep.subr.mxu0 %v1584
        %1656 = vmatpush1.xpose.msra.mxu0 %v1583
        %1657 = vmatprep.subr.mxu0 %v1586
        %1658 = vmatpush1.xpose.msra.mxu0 %v1585
        %1659 = vmatprep.subr.mxu0 %v1588
        %1660 = vmatpush1.xpose.msra.mxu0 %v1587
        %1661 = vmatprep.subr.mxu0 %v1590
        %1662 = vmatpush1.xpose.msra.mxu0 %v1589
        %1663 = vmatprep.subr.mxu0 %v1592
        %1664 = vmatpush1.xpose.msra.mxu0 %v1591
        %1665 = vmatprep.subr.mxu0 %v1594
        %1666 = vmatpush1.xpose.msra.mxu0 %v1593
        %1667 = vmatprep.subr.mxu0 %v1596
        %1668 = vmatpush1.xpose.msra.mxu0 %v1595
        %1669 = vmatprep.subr.mxu0 %v1598
        %1670 = vmatpush1.xpose.msra.mxu0 %v1597
        %1671 = vmatprep.subr.mxu0 %v1600
        %1672 = vmatpush1.xpose.msra.mxu0 %v1599
        %1673 = vmatprep.subr.mxu0 %v1602
        %1674 = vmatpush1.xpose.msra.mxu0 %v1601
        %1675 = vmatprep.subr.mxu0 %v1604
        %1676 = vmatpush1.xpose.msra.mxu0 %v1603
        %1677 = vmatprep.subr.mxu0 %v1606
        %1678 = vmatpush1.xpose.msra.mxu0 %v1605
        %1679 = vmatprep.subr.mxu0 %v1608
        %1680 = vmatpush1.xpose.msra.mxu0 %v1607
        %1681 = vmatprep.subr.mxu0 %v1610
        %1682 = vmatpush1.xpose.msra.mxu0 %v1609
        %1683 = vmatprep.subr.mxu0 %v1612
        %1684 = vmatpush1.xpose.msra.mxu0 %v1611
        %1685 = vmatprep.subr.mxu0 %v1614
        %1686 = vmatpush1.xpose.msra.mxu0 %v1613
        %1687 = vmatprep.subr.mxu0 %v1616
        %1688 = vmatpush1.xpose.msra.mxu0 %v1615
        %1689 = vmatprep.subr.mxu0 %v1618
        %1690 = vmatpush1.xpose.msra.mxu0 %v1617
        %1691 = vmatprep.subr.mxu0 %v1620
        %1692 = vmatpush1.xpose.msra.mxu0 %v1619
        %1693 = vmatprep.subr.mxu0 %v1622
        %1694 = vmatpush1.xpose.msra.mxu0 %v1621
        %1695 = vmatprep.subr.mxu0 %v1624
        %1696 = vmatpush1.xpose.msra.mxu0 %v1623
        %1697 = vmatprep.subr.mxu0 %v1626
        %1698 = vmatpush1.xpose.msra.mxu0 %v1625
        %1699 = vmatprep.subr.mxu0 %v1628
        %1700 = vmatpush1.xpose.msra.mxu0 %v1627
        %1701 = vmatprep.subr.mxu0 %v1630
        %1702 = vmatpush1.xpose.msra.mxu0 %v1629
        %1703 = vmatprep.subr.mxu0 %v1632
        %1704 = vmatpush1.xpose.msra.mxu0 %v1631
        %1705 = vmatprep.subr.mxu0 %v1634
        %1706 = vmatpush1.xpose.msra.mxu0 %v1633
        %1707 = vmatprep.subr.mxu0 %v1636
        %1708 = vmatpush1.xpose.msra.mxu0 %v1635
        %1709 = vmatprep.mubr.f32.mxu0 %v1638
        %1710 = vmatmul.mubr.f32.gmra.mrb[0].mxu0 %v1637
        %v1711 = vpop.f32.mrb[0].mxu0
        %v1712 = vadd.f32 0.0, %v1711
        %v1713 = vpop.f32.mrb[0].mxu0
        %v1714 = vadd.f32 0.0, %v1713
        %1715 = vmatprep.mubr.f32.mxu0 %v1640
        %1716 = vmatmul.mubr.f32.gmra.mrb[0].mxu0 %v1639
        %v1717 = vpop.f32.mrb[0].mxu0
        %v1718 = vadd.f32 0.0, %v1717
        %v1719 = vpop.f32.mrb[0].mxu0
        %v1720 = vadd.f32 0.0, %v1719
        %1721 = vmatprep.mubr.f32.mxu0 %v1642
        %1722 = vmatmul.mubr.f32.gmra.mrb[0].mxu0 %v1641
        %v1723 = vpop.f32.mrb[0].mxu0
        %v1724 = vadd.f32 0.0, %v1723
        %v1725 = vpop.f32.mrb[0].mxu0
        %v1726 = vadd.f32 0.0, %v1725
        %1727 = vmatprep.mubr.f32.mxu0 %v1644
        %1728 = vmatmul.mubr.f32.gmra.mrb[0].mxu0 %v1643
        %v1729 = vpop.f32.mrb[0].mxu0
        %v1730 = vadd.f32 0.0, %v1729
        %v1731 = vpop.f32.mrb[0].mxu0
        %v1732 = vadd.f32 0.0, %v1731
        %1733 = vdwg.mxu0
        %s1734 = sld [smem:[#allocation5]]
        %v1735 = vstv %s1734
        %v1736 = vmul.f32 %v1735, %v1712
        %v1737 = vmul.f32 %v1735, %v1714
        %v1738 = vmul.f32 %v1735, %v1718
        %v1739 = vmul.f32 %v1735, %v1720
        %v1740 = vmul.f32 %v1735, %v1724
        %v1741 = vmul.f32 %v1735, %v1726
        %v1742 = vmul.f32 %v1735, %v1730
        %v1743 = vmul.f32 %v1735, %v1732
        %v1744 = vadd.f32 %v1736, %v641
        %v1745 = vadd.f32 %v1737, %v642
        %v1746 = vadd.f32 %v1738, %v643
        %v1747 = vadd.f32 %v1739, %v644
        %v1748 = vadd.f32 %v1740, %v645
        %v1749 = vadd.f32 %v1741, %v646
        %v1750 = vadd.f32 %v1742, %v647
        %v1751 = vadd.f32 %v1743, %v648
        %1752 = vst [vmem:[%s376] sm:$0xff] %v1744
        %1753 = vst [vmem:[%s376 + $0x8] sm:$0xff] %v1745
        %1754 = vst [vmem:[%s376 + $0x10] sm:$0xff] %v1746
        %1755 = vst [vmem:[%s376 + $0x18] sm:$0xff] %v1747
        %1756 = vst [vmem:[%s376 + $0x20] sm:$0xff] %v1748
        %1757 = vst [vmem:[%s376 + $0x28] sm:$0xff] %v1749
        %1758 = vst [vmem:[%s376 + $0x30] sm:$0xff] %v1750
        %1759 = vst [vmem:[%s376 + $0x38] sm:$0xff] %v1751
        %1760 = vst [vmem:[%s383] sm:$0xff] %v1573
        %1761 = vst [vmem:[%s383 + $0x8] sm:$0xff] %v1574
        %1762 = vst [vmem:[%s383 + $0x10] sm:$0xff] %v1575
        %1763 = vst [vmem:[%s383 + $0x18] sm:$0xff] %v1576
        %1764 = vst [vmem:[%s383 + $0x20] sm:$0xff] %v1577
        %1765 = vst [vmem:[%s383 + $0x28] sm:$0xff] %v1578
        %1766 = vst [vmem:[%s383 + $0x30] sm:$0xff] %v1579
        %1767 = vst [vmem:[%s383 + $0x38] sm:$0xff] %v1580
        %1768 = vst [vmem:[%s383 + $0x40] sm:$0xff] %v1581
        %1769 = vst [vmem:[%s383 + $0x48] sm:$0xff] %v1582
        %1770 = vst [vmem:[%s383 + $0x50] sm:$0xff] %v1583
        %1771 = vst [vmem:[%s383 + $0x58] sm:$0xff] %v1584
        %1772 = vst [vmem:[%s383 + $0x60] sm:$0xff] %v1585
        %1773 = vst [vmem:[%s383 + $0x68] sm:$0xff] %v1586
        %1774 = vst [vmem:[%s383 + $0x70] sm:$0xff] %v1587
        %1775 = vst [vmem:[%s383 + $0x78] sm:$0xff] %v1588
        %1776 = vst [vmem:[%s383 + $0x80] sm:$0xff] %v1589
        %1777 = vst [vmem:[%s383 + $0x88] sm:$0xff] %v1590
        %1778 = vst [vmem:[%s383 + $0x90] sm:$0xff] %v1591
        %1779 = vst [vmem:[%s383 + $0x98] sm:$0xff] %v1592
        %1780 = vst [vmem:[%s383 + $0xa0] sm:$0xff] %v1593
        %1781 = vst [vmem:[%s383 + $0xa8] sm:$0xff] %v1594
        %1782 = vst [vmem:[%s383 + $0xb0] sm:$0xff] %v1595
        %1783 = vst [vmem:[%s383 + $0xb8] sm:$0xff] %v1596
        %1784 = vst [vmem:[%s383 + $0xc0] sm:$0xff] %v1597
        %1785 = vst [vmem:[%s383 + $0xc8] sm:$0xff] %v1598
        %1786 = vst [vmem:[%s383 + $0xd0] sm:$0xff] %v1599
        %1787 = vst [vmem:[%s383 + $0xd8] sm:$0xff] %v1600
        %1788 = vst [vmem:[%s383 + $0xe0] sm:$0xff] %v1601
        %1789 = vst [vmem:[%s383 + $0xe8] sm:$0xff] %v1602
        %1790 = vst [vmem:[%s383 + $0xf0] sm:$0xff] %v1603
        %1791 = vst [vmem:[%s383 + $0xf8] sm:$0xff] %v1604
        %1792 = vst [vmem:[%s383 + $0x100] sm:$0xff] %v1605
        %1793 = vst [vmem:[%s383 + $0x108] sm:$0xff] %v1606
        %1794 = vst [vmem:[%s383 + $0x110] sm:$0xff] %v1607
        %1795 = vst [vmem:[%s383 + $0x118] sm:$0xff] %v1608
        %1796 = vst [vmem:[%s383 + $0x120] sm:$0xff] %v1609
        %1797 = vst [vmem:[%s383 + $0x128] sm:$0xff] %v1610
        %1798 = vst [vmem:[%s383 + $0x130] sm:$0xff] %v1611
        %1799 = vst [vmem:[%s383 + $0x138] sm:$0xff] %v1612
        %1800 = vst [vmem:[%s383 + $0x140] sm:$0xff] %v1613
        %1801 = vst [vmem:[%s383 + $0x148] sm:$0xff] %v1614
        %1802 = vst [vmem:[%s383 + $0x150] sm:$0xff] %v1615
        %1803 = vst [vmem:[%s383 + $0x158] sm:$0xff] %v1616
        %1804 = vst [vmem:[%s383 + $0x160] sm:$0xff] %v1617
        %1805 = vst [vmem:[%s383 + $0x168] sm:$0xff] %v1618
        %1806 = vst [vmem:[%s383 + $0x170] sm:$0xff] %v1619
        %1807 = vst [vmem:[%s383 + $0x178] sm:$0xff] %v1620
        %1808 = vst [vmem:[%s383 + $0x180] sm:$0xff] %v1621
        %1809 = vst [vmem:[%s383 + $0x188] sm:$0xff] %v1622
        %1810 = vst [vmem:[%s383 + $0x190] sm:$0xff] %v1623
        %1811 = vst [vmem:[%s383 + $0x198] sm:$0xff] %v1624
        %1812 = vst [vmem:[%s383 + $0x1a0] sm:$0xff] %v1625
        %1813 = vst [vmem:[%s383 + $0x1a8] sm:$0xff] %v1626
        %1814 = vst [vmem:[%s383 + $0x1b0] sm:$0xff] %v1627
        %1815 = vst [vmem:[%s383 + $0x1b8] sm:$0xff] %v1628
        %1816 = vst [vmem:[%s383 + $0x1c0] sm:$0xff] %v1629
        %1817 = vst [vmem:[%s383 + $0x1c8] sm:$0xff] %v1630
        %1818 = vst [vmem:[%s383 + $0x1d0] sm:$0xff] %v1631
        %1819 = vst [vmem:[%s383 + $0x1d8] sm:$0xff] %v1632
        %1820 = vst [vmem:[%s383 + $0x1e0] sm:$0xff] %v1633
        %1821 = vst [vmem:[%s383 + $0x1e8] sm:$0xff] %v1634
        %1822 = vst [vmem:[%s383 + $0x1f0] sm:$0xff] %v1635
        %1823 = vst [vmem:[%s383 + $0x1f8] sm:$0xff] %v1636
        %s1824 = sand.u32 %s229, 1
        %s1825 = scalar_lea.sflag [#allocation8], %s1824
        %s1826 = sand.u32 %s229, 1
        %s1827 = smul.addr %s1826, 64
        %s1828 = scalar_lea.vmem [#allocation9], %s1827
        %s1829 = sand.u32 %s257, 1
        %s1830 = scalar_lea.sflag [#allocation11], %s1829
        %s1831 = sand.u32 %s257, 1
        %s1832 = smul.addr %s1831, 512
        %s1833 = scalar_lea.vmem [#allocation10], %s1832
        // Predicated region
        $region66: #{tpu_custom_call.1} parent=51 // pred_check
          %p1834 = pneg %p239
        $region67: #{tpu_custom_call.1} parent=51 // pred_check_branch
          %1836 = sbr.rel (%p1834) target = $region69
        $region68: #{tpu_custom_call.1} parent=51 // pred_region
          %s1837 = smul.u32 2, %s37
          %s1839 = ssub.s32 1024, 1024
          %1840 = vsyncadd %s1825, %s1839
          %s1841 = smul.addr %s36, 8
          %s1842 = sadd.s32 %s1837, %s1841
          %s1843 = smul.addr %s1842, 128
          %s1844 = scalar_lea.hbm %s9, %s1843
          %s1845 = sshll.u32 %s1828, 4
          %s1846 = int_to_ptr.vmem [resolvable:$true] %s1845
          %1851 = dma.vmem_to_hbm [thread:$0]  %s1846, 1024, %s1844, %s1825, 256, 256, 16
        $region69: #{tpu_custom_call.1} parent=51 // pred_fallthru
          _
        // Predicated region
        $region70: #{tpu_custom_call.1} parent=51 // pred_check
          %p1852 = pneg %p267
        $region71: #{tpu_custom_call.1} parent=51 // pred_check_branch
          %1854 = sbr.rel (%p1852) target = $region73
        $region72: #{tpu_custom_call.1} parent=51 // pred_region
          %s1855 = smul.u32 32, %s37
          %s1857 = ssub.s32 8192, 8192
          %1858 = vsyncadd %s1830, %s1857
          %s1859 = smul.addr %s1855, 2
          %s1860 = smul.addr %s36, 64
          %s1861 = sadd.s32 %s1859, %s1860
          %s1862 = smul.addr %s1861, 128
          %s1863 = scalar_lea.hbm %s10, %s1862
          %s1864 = sshll.u32 %s1833, 4
          %s1865 = int_to_ptr.vmem [resolvable:$true] %s1864
          %1870 = dma.vmem_to_hbm [thread:$0]  %s1865, 8192, %s1863, %s1830, 256, 256, 16
        $region73: #{tpu_custom_call.1} parent=51 // pred_fallthru
          _
      $region52: #{tpu_custom_call.1} parent=5 // pred_fallthru
        _
      %p1871 = scmp.le.s32.totalorder 2, %s27
      // Predicated region
      $region74: #{tpu_custom_call.1} parent=5 // pred_check
        %p1872 = pneg %p1871
      $region75: #{tpu_custom_call.1} parent=5 // pred_check_branch
        %1874 = sbr.rel (%p1872) target = $region77
      $region76: #{tpu_custom_call.1} parent=5 // pred_region
        %s1875 = ssub.s32 %s27, 2
        // Predicated region
        $region78: #{tpu_custom_call.1} parent=76 // pred_check
          %p1876 = pneg %p245
        $region79: #{tpu_custom_call.1} parent=76 // pred_check_branch
          %1878 = sbr.rel (%p1876) target = $region81
        $region80: #{tpu_custom_call.1} parent=76 // pred_region
          %s1879 = sand.u32 %s230, 1
          %s1880 = scalar_lea.sflag [#allocation8], %s1879
          %s1881 = sand.u32 %s230, 1
          %s1882 = smul.addr %s1881, 64
          %s1883 = scalar_lea.vmem [#allocation9], %s1882
          %1884 = dma.done %s1880, 1024
        $region81: #{tpu_custom_call.1} parent=76 // pred_fallthru
          _
        // Predicated region
        $region82: #{tpu_custom_call.1} parent=76 // pred_check
          %p1885 = pneg %p273
        $region83: #{tpu_custom_call.1} parent=76 // pred_check_branch
          %1887 = sbr.rel (%p1885) target = $region85
        $region84: #{tpu_custom_call.1} parent=76 // pred_region
          %s1888 = sand.u32 %s258, 1
          %s1889 = scalar_lea.sflag [#allocation11], %s1888
          %s1890 = sand.u32 %s258, 1
          %s1891 = smul.addr %s1890, 512
          %s1892 = scalar_lea.vmem [#allocation10], %s1891
          %1893 = dma.done %s1889, 8192
        $region85: #{tpu_custom_call.1} parent=76 // pred_fallthru
          _
      $region77: #{tpu_custom_call.1} parent=5 // pred_fallthru
        _
    $region6: #{tpu_custom_call.1} parent=1 // loop_footer
      %s31 = sadd.s32 1, %s27
    $region7: #{tpu_custom_call.1} parent=1 // loop_footer_branch
      %26 = sbr.rel target = $region3
    $region8: #{tpu_custom_call.1} parent=1 // loop_exit
      _
    %1894 = vsyncpa [#allocation7], 1
    %s1895 = scalar_lea.sflag [#allocation7], 1
    %1896 = vsyncpa %s1895, 1
    %1897 = vsyncpa [#allocation8], 1
    %s1898 = scalar_lea.sflag [#allocation8], 1
    %1899 = vsyncpa %s1898, 1
    %1900 = vsyncpa [#allocation11], 1
    %s1901 = scalar_lea.sflag [#allocation11], 1
    %1902 = vsyncpa %s1901, 1

</llo_original>
